<compile_context>
chip_gen: v7x
topology: tpu7x:2x2x1
jax: 0.10.0
libtpu: 0.0.40
codegen_flags: <defaults>
</compile_context>

<pallas_src>
import jax
import jax.numpy as jnp
from jax import lax
from jax.experimental import pallas as pl
from jax.experimental.pallas import tpu as pltpu

# (kh, kw, ph, pw) for the 8 pyramid branches, matching the PyTorch __init__ order.
PYRAMID = [
    (5, 1, 2, 0),
    (1, 5, 0, 2),
    (3, 1, 1, 0),
    (1, 3, 0, 1),
    (2, 1, 1, 0),
    (1, 2, 0, 1),
    (2, 2, 1, 1),
    (3, 3, 1, 1),
]
EPS = 1e-5  # PyTorch BatchNorm2d default

# Window positions (coords inside the padded window) of the two shared im2cols.
POS_3X3 = tuple((r, c) for r in range(3) for c in range(3))          # pad = 1
POS_CROSS = ((0, 2), (4, 2), (2, 0), (2, 4))                         # pad = 2 (5x5 coords)


def _round_up(x, m):
    return ((x + m - 1) // m) * m


def _bn_scale_bias(gamma, beta, mean, var):
    scale = gamma / jnp.sqrt(var + EPS)
    return scale, beta - mean * scale


# ---------------- fused Pallas kernel (2 pyramid matmuls + BN + ReLU6 + shrink) -------
def _make_kernel(tn, tsub):
    n_sub = tn // tsub

    def kernel(pa_ref, pb_ref, w1a_ref, w1b_ref, s1_ref, b1_ref,
               w2_ref, s2_ref, b2_ref, o_ref):
        def body(j, carry):
            row0 = pl.multiple_of(j * tsub, tsub)
            # pyramid convs: 3x3-window matmul + cross matmul, f32 accumulation
            h = jnp.dot(pa_ref[pl.ds(row0, tsub), :], w1a_ref[...],
                        preferred_element_type=jnp.float32)
            h = h + jnp.dot(pb_ref[pl.ds(row0, tsub), :], w1b_ref[...],
                            preferred_element_type=jnp.float32)
            # BN (f32 per-channel scale + bias) + ReLU6
            h = jnp.clip(h * s1_ref[...] + b1_ref[...], 0.0, 6.0)
            # 1x1 shrink conv + BN
            o = jnp.dot(h.astype(w2_ref.dtype), w2_ref[...],
                        preferred_element_type=jnp.float32)
            o_ref[pl.ds(row0, tsub), :] = (o * s2_ref[...] + b2_ref[...]).astype(o_ref.dtype)
            return carry

        lax.fori_loop(0, n_sub, body, 0, unroll=True)

    return kernel


# ---------------- host-side helpers ----------------
def _im2col(x_nhwc, pad, positions, stride, Ho, Wo):
    """Gather the listed window positions (row-col coords inside the padded window)."""
    B, H, W, C = x_nhwc.shape
    xp = jnp.pad(x_nhwc, ((0, 0), (pad, pad), (pad, pad), (0, 0)))
    cols = [xp[:, r:r + stride * (Ho - 1) + 1:stride,
               c:c + stride * (Wo - 1) + 1:stride, :] for (r, c) in positions]
    patches = jnp.stack(cols, axis=3)                        # (B, Ho, Wo, P, C)
    return patches.reshape(B * Ho * Wo, len(positions) * C)


def _vmem_need(tn, Ka_pad, Kb_pad, H_pad, C_pad, in_bytes, out_bytes):
    tsub = min(tn, 256)
    return (2 * tn * (Ka_pad + Kb_pad) * in_bytes            # patch tiles (double buffered)
            + (Ka_pad + Kb_pad) * H_pad * in_bytes           # W1a + W1b (single buffered)
            + H_pad * C_pad * in_bytes                       # W2      (single buffered)
            + 4 * (H_pad + C_pad) * 4                        # scales + biases (f32)
            + 2 * tn * C_pad * out_bytes                     # output tile (double buffered)
            + tsub * H_pad * (4 + in_bytes))                 # live h (f32) + bf16 copy


def _choose_tn(N, need_fn, budget, min_steps=4):
    ladder = (1024, 512, 256, 128)
    fitting = [t for t in ladder if need_fn(t) <= budget] or [128]
    for t in fitting:                      # largest tile that still gives >= min_steps grid steps
        if pl.cdiv(N, t) >= min_steps:
            return t
    return fitting[-1]                     # N too small for min_steps: minimize padding


def lw_bottleneck_forward(x_nchw, params, stride, *,
                          compute_dtype=jnp.bfloat16, out_dtype=jnp.float32):
    B, C, H, W = x_nchw.shape
    Ho, Wo = (H // stride, W // stride) if stride > 1 else (H, W)
    Cout = params["shrink_w"].shape[0]
    C8 = 8 * C
    Ka, Kb = 9 * C, 4 * C                                     # 3x3 window / cross window

    # Lane-dense padded widths.
    Ka_pad = _round_up(Ka, 128)
    Kb_pad = _round_up(Kb, 128)
    H_pad = _round_up(C8, 128)
    C_pad = _round_up(Cout, 128)

    in_bytes = jnp.dtype(compute_dtype).itemsize
    out_bytes = jnp.dtype(out_dtype).itemsize

    # ---- shared im2cols, built directly in the compute dtype (bf16) ----
    # TODO(synk): for large H*W, build the patch tiles inside the kernel from an
    # HBM-resident NHWC input (memory_space=pl.ANY + halo DMA + pltpu.roll) instead of
    # materializing the im2col arrays in HBM; for very large C add a K-reduction grid
    # axis with a VMEM accumulator.
    x_nhwc = jnp.transpose(x_nchw, (0, 2, 3, 1)).astype(compute_dtype)
    pa = _im2col(x_nhwc, 1, POS_3X3, stride, Ho, Wo)          # (N, 9C)
    pb = _im2col(x_nhwc, 2, POS_CROSS, stride, Ho, Wo)        # (N, 4C)
    N = B * Ho * Wo

    # ---- TN / VMEM sizing against the actual chip (v7x-safe) ----
    try:
        vmem_capacity = int(pltpu.get_tpu_info().vmem_capacity_bytes)
    except Exception:
        vmem_capacity = 64 * 2**20                            # conservative (v7x) fallback
    budget = (vmem_capacity * 3) // 4

    def need_fn(t):
        return _vmem_need(t, Ka_pad, Kb_pad, H_pad, C_pad, in_bytes, out_bytes)

    TN = _choose_tn(N, need_fn, budget, min_steps=4)
    TSUB = min(TN, 256)
    N_pad = _round_up(N, TN)
    vmem_limit = int(max(16 * 2**20, min(budget, need_fn(TN) + 4 * 2**20)))

    pa = jnp.pad(pa, ((0, N_pad - N), (0, Ka_pad - Ka)))
    pb = jnp.pad(pb, ((0, N_pad - N), (0, Kb_pad - Kb)))

    # ---- W1a / W1b: map each branch's taps into the shared windows (raw weights) ----
    # Branch tap (dh, dw) with padding (ph, pw) lands at 5x5 window position
    # (r, c) = (dh + 2 - ph, dw + 2 - pw).  r, c in [1, 3] -> 3x3 window; else cross.
    Wa = jnp.zeros((Ka_pad, H_pad), jnp.float32)
    Wb = jnp.zeros((Kb_pad, H_pad), jnp.float32)
    s1 = jnp.zeros((1, H_pad), jnp.float32)
    b1 = jnp.zeros((1, H_pad), jnp.float32)
    for i, (kh, kw, ph, pw) in enumerate(PYRAMID):
        wi = params["conv_w"][i]                              # (O=C, I=C, kh, kw)
        g, be, m, v = params["bn"][i]
        sc, bi = _bn_scale_bias(g, be, m, v)
        s1 = s1.at[0, i * C:(i + 1) * C].set(sc)
        b1 = b1.at[0, i * C:(i + 1) * C].set(bi)
        for dh in range(kh):
            for dw in range(kw):
                r = dh + 2 - ph
                c = dw + 2 - pw
                blk = jnp.transpose(wi[:, :, dh, dw])         # (I, O)
                if 1 <= r <= 3 and 1 <= c <= 3:
                    p = (r - 1) * 3 + (c - 1)
                    Wa = Wa.at[p * C:(p + 1) * C, i * C:(i + 1) * C].set(blk)
                else:
                    p = POS_CROSS.index((r, c))
                    Wb = Wb.at[p * C:(p + 1) * C, i * C:(i + 1) * C].set(blk)

    # ---- W2: shrink 1x1 conv (Cout, 8C) -> (8C, Cout), raw; BN applied in-kernel ----
    g, be, m, v = params["shrink_bn"]
    sc2, bi2 = _bn_scale_bias(g, be, m, v)
    W2 = jnp.zeros((H_pad, C_pad), jnp.float32).at[:C8, :Cout].set(
        jnp.transpose(params["shrink_w"]).astype(jnp.float32))
    s2 = jnp.zeros((1, C_pad), jnp.float32).at[0, :Cout].set(sc2)
    b2 = jnp.zeros((1, C_pad), jnp.float32).at[0, :Cout].set(bi2)

    Wa = Wa.astype(compute_dtype)
    Wb = Wb.astype(compute_dtype)
    W2 = W2.astype(compute_dtype)

    flops = 2 * N_pad * (Ka_pad + Kb_pad) * H_pad + 2 * N_pad * H_pad * C_pad
    bytes_accessed = (N_pad * (Ka_pad + Kb_pad) * in_bytes
                      + (Ka_pad + Kb_pad) * H_pad * in_bytes
                      + H_pad * C_pad * in_bytes
                      + N_pad * C_pad * out_bytes)
    cost = pl.CostEstimate(flops=int(flops), transcendentals=0,
                           bytes_accessed=int(bytes_accessed))

    kernel = _make_kernel(TN, TSUB)

    def const_spec(shape, single_buffer):
        if single_buffer:
            return pl.BlockSpec(shape, lambda i: (0, 0), pipeline_mode=pl.Buffered(1))
        return pl.BlockSpec(shape, lambda i: (0, 0))

    def run(single_buffer):
        in_specs = [
            pl.BlockSpec((TN, Ka_pad), lambda i: (i, 0)),
            pl.BlockSpec((TN, Kb_pad), lambda i: (i, 0)),
            const_spec((Ka_pad, H_pad), single_buffer),
            const_spec((Kb_pad, H_pad), single_buffer),
            const_spec((1, H_pad), single_buffer),
            const_spec((1, H_pad), single_buffer),
            const_spec((H_pad, C_pad), single_buffer),
            const_spec((1, C_pad), single_buffer),
            const_spec((1, C_pad), single_buffer),
        ]
        return pl.pallas_call(
            kernel,
            out_shape=jax.ShapeDtypeStruct((N_pad, C_pad), out_dtype),
            grid=(N_pad // TN,),
            in_specs=in_specs,
            out_specs=pl.BlockSpec((TN, C_pad), lambda i: (i, 0)),
            compiler_params=pltpu.CompilerParams(
                dimension_semantics=("parallel",),
                vmem_limit_bytes=vmem_limit),
            cost_estimate=cost,
        )(pa, pb, Wa, Wb, s1, b1, W2, s2, b2)

    try:
        # Single-buffer the constant operands (their block index never changes).
        out_pad = jax.block_until_ready(run(True))
    except Exception:
        # Fallback: default (double) buffering if this JAX rejects Buffered(1).
        out_pad = run(False)

    return out_pad[:N, :Cout].astype(jnp.float32).reshape(B, Ho, Wo, Cout)   # NHWC


# ---------------- pure-JAX reference (NCHW, mirrors the PyTorch forward) ----------------
def reference_forward(x_nchw, params, stride):
    B, C, H, W = x_nchw.shape
    Ho, Wo = (H // stride, W // stride) if stride > 1 else (H, W)
    outs = []
    for i, (kh, kw, ph, pw) in enumerate(PYRAMID):
        y = lax.conv_general_dilated(
            x_nchw, params["conv_w"][i], (stride, stride), [(ph, ph), (pw, pw)],
            dimension_numbers=("NCHW", "OIHW", "NCHW"), precision=lax.Precision.HIGHEST)
        y = y[:, :, :Ho, :Wo]
        g, be, m, v = params["bn"][i]
        sc, bi = _bn_scale_bias(g, be, m, v)
        y = jnp.clip(y * sc[None, :, None, None] + bi[None, :, None, None], 0.0, 6.0)
        outs.append(y)
    cat = jnp.concatenate(outs, axis=1)
    y = lax.conv_general_dilated(
        cat, params["shrink_w"][:, :, None, None], (1, 1), [(0, 0), (0, 0)],
        dimension_numbers=("NCHW", "OIHW", "NCHW"), precision=lax.Precision.HIGHEST)
    g, be, m, v = params["shrink_bn"]
    sc, bi = _bn_scale_bias(g, be, m, v)
    return y * sc[None, :, None, None] + bi[None, :, None, None]


# ---------------- deterministic parameter init ----------------
def init_params(key, in_channels, out_channels):
    params = {"conv_w": [], "bn": []}
    for (kh, kw, ph, pw) in PYRAMID:
        key, k1, k2, k3, k4, k5 = jax.random.split(key, 6)
        params["conv_w"].append(
            0.1 * jax.random.normal(k1, (in_channels, in_channels, kh, kw), jnp.float32))
        params["bn"].append((
            jax.random.uniform(k2, (in_channels,), jnp.float32, 0.5, 1.5),   # gamma
            0.1 * jax.random.normal(k3, (in_channels,), jnp.float32),        # beta
            0.1 * jax.random.normal(k4, (in_channels,), jnp.float32),        # running_mean
            jax.random.uniform(k5, (in_channels,), jnp.float32, 0.5, 1.5),   # running_var
        ))
    key, k1, k2, k3, k4, k5 = jax.random.split(key, 6)
    params["shrink_w"] = 0.1 * jax.random.normal(
        k1, (out_channels, 8 * in_channels), jnp.float32)
    params["shrink_bn"] = (
        jax.random.uniform(k2, (out_channels,), jnp.float32, 0.5, 1.5),
        0.1 * jax.random.normal(k3, (out_channels,), jnp.float32),
        0.1 * jax.random.normal(k4, (out_channels,), jnp.float32),
        jax.random.uniform(k5, (out_channels,), jnp.float32, 0.5, 1.5),
    )
    return params


if __name__ == "__main__":
    B, C, H, W = 2, 4, 16, 16
    Cout = 8

    key = jax.random.PRNGKey(0)
    kx, kp = jax.random.split(key)
    x = jax.random.normal(kx, (B, C, H, W), jnp.float32)      # NCHW, like the PyTorch module
    params = init_params(kp, C, Cout)

    # stride=2 (single-step grid) and stride=1 (multi-step grid) both validated.
    for stride in (2, 1):
        Ho, Wo = (H // stride, W // stride) if stride > 1 else (H, W)
        out_nhwc = jax.block_until_ready(lw_bottleneck_forward(x, params, stride))
        out_nchw = jnp.transpose(out_nhwc, (0, 3, 1, 2))
        ref = jax.block_until_ready(reference_forward(x, params, stride))
        assert out_nchw.shape == ref.shape == (B, Cout, Ho, Wo), (out_nchw.shape, ref.shape)
        # Tolerance sized for bf16 MXU operands with f32 accumulation and f32 BN math.
        max_err = float(jnp.max(jnp.abs(out_nchw - ref)))
        assert jnp.allclose(out_nchw, ref, rtol=2e-2, atol=2e-2), (stride, max_err)

    print("KERNEL_OK")
</pallas_src>

<mosaic_0001>
module attributes {stable_mosaic.version = 11 : i64} {
  func.func @kernel(%arg0: i32, %arg1: memref<128x128xbf16, #tpu.memory_space<vmem>>, %arg2: memref<128x128xbf16, #tpu.memory_space<vmem>>, %arg3: memref<128x128xbf16, #tpu.memory_space<vmem>>, %arg4: memref<128x128xbf16, #tpu.memory_space<vmem>>, %arg5: memref<1x128xf32, #tpu.memory_space<vmem>>, %arg6: memref<1x128xf32, #tpu.memory_space<vmem>>, %arg7: memref<128x128xbf16, #tpu.memory_space<vmem>>, %arg8: memref<1x128xf32, #tpu.memory_space<vmem>>, %arg9: memref<1x128xf32, #tpu.memory_space<vmem>>, %arg10: memref<128x128xf32, #tpu.memory_space<vmem>>) attributes {dimension_semantics = [#tpu.dimension_semantics<parallel>], iteration_bounds = array<i64: 1>, scalar_prefetch = 0 : i64, scratch_operands = 0 : i64, tpu.core_type = #tpu.core_type<tc>, window_params = [{transform_indices = @transform_0, window_bounds = array<i64: 128, 128>}, {transform_indices = @transform_1, window_bounds = array<i64: 128, 128>}, {pipeline_mode = #tpu.pipeline_mode<synchronous>, transform_indices = @transform_2, window_bounds = array<i64: 128, 128>}, {pipeline_mode = #tpu.pipeline_mode<synchronous>, transform_indices = @transform_3, window_bounds = array<i64: 128, 128>}, {pipeline_mode = #tpu.pipeline_mode<synchronous>, transform_indices = @transform_4, window_bounds = array<i64: 1, 128>}, {pipeline_mode = #tpu.pipeline_mode<synchronous>, transform_indices = @transform_5, window_bounds = array<i64: 1, 128>}, {pipeline_mode = #tpu.pipeline_mode<synchronous>, transform_indices = @transform_6, window_bounds = array<i64: 128, 128>}, {pipeline_mode = #tpu.pipeline_mode<synchronous>, transform_indices = @transform_7, window_bounds = array<i64: 1, 128>}, {pipeline_mode = #tpu.pipeline_mode<synchronous>, transform_indices = @transform_8, window_bounds = array<i64: 1, 128>}, {transform_indices = @transform_9, window_bounds = array<i64: 128, 128>}]} {
    %c0_i32 = arith.constant 0 : i32
    %c128_i32 = arith.constant 128 : i32
    %0 = arith.muli %c0_i32, %c128_i32 : i32
    %1 = tpu.assume_multiple %0, 128 : i32
    %2 = arith.index_cast %1 : i32 to index
    %c0 = arith.constant 0 : index
    %3 = vector.load %arg1[%2, %c0] : memref<128x128xbf16, #tpu.memory_space<vmem>>, vector<128x128xbf16>
    %c0_0 = arith.constant 0 : index
    %c0_1 = arith.constant 0 : index
    %4 = vector.load %arg3[%c0_0, %c0_1] : memref<128x128xbf16, #tpu.memory_space<vmem>>, vector<128x128xbf16>
    %cst = arith.constant dense<0.000000e+00> : vector<128x128xf32>
    %5 = tpu.matmul %3, %4, %cst {dimension_numbers = #tpu.dot_dimension_numbers<[1], [0], [0], [1], [0, 0, 1, 1], [], []>} : vector<128x128xbf16>, vector<128x128xbf16>, vector<128x128xf32> -> vector<128x128xf32>
    %6 = arith.index_cast %1 : i32 to index
    %c0_2 = arith.constant 0 : index
    %7 = vector.load %arg2[%6, %c0_2] : memref<128x128xbf16, #tpu.memory_space<vmem>>, vector<128x128xbf16>
    %c0_3 = arith.constant 0 : index
    %c0_4 = arith.constant 0 : index
    %8 = vector.load %arg4[%c0_3, %c0_4] : memref<128x128xbf16, #tpu.memory_space<vmem>>, vector<128x128xbf16>
    %cst_5 = arith.constant dense<0.000000e+00> : vector<128x128xf32>
    %9 = tpu.matmul %7, %8, %cst_5 {dimension_numbers = #tpu.dot_dimension_numbers<[1], [0], [0], [1], [0, 0, 1, 1], [], []>} : vector<128x128xbf16>, vector<128x128xbf16>, vector<128x128xf32> -> vector<128x128xf32>
    %10 = arith.addf %5, %9 : vector<128x128xf32>
    %c0_6 = arith.constant 0 : index
    %c0_7 = arith.constant 0 : index
    %11 = vector.load %arg5[%c0_6, %c0_7] : memref<1x128xf32, #tpu.memory_space<vmem>>, vector<1x128xf32>
    %12 = vector.broadcast %11 : vector<1x128xf32> to vector<128x128xf32>
    %13 = arith.mulf %10, %12 : vector<128x128xf32>
    %c0_8 = arith.constant 0 : index
    %c0_9 = arith.constant 0 : index
    %14 = vector.load %arg6[%c0_8, %c0_9] : memref<1x128xf32, #tpu.memory_space<vmem>>, vector<1x128xf32>
    %15 = vector.broadcast %14 : vector<1x128xf32> to vector<128x128xf32>
    %16 = arith.addf %13, %15 : vector<128x128xf32>
    %cst_10 = arith.constant 0.000000e+00 : f32
    %cst_11 = arith.constant 6.000000e+00 : f32
    %17 = vector.broadcast %cst_10 : f32 to vector<128x128xf32>
    %18 = arith.maximumf %17, %16 : vector<128x128xf32>
    %19 = vector.broadcast %cst_11 : f32 to vector<128x128xf32>
    %20 = arith.minimumf %19, %18 : vector<128x128xf32>
    %21 = arith.truncf %20 : vector<128x128xf32> to vector<128x128xbf16>
    %c0_12 = arith.constant 0 : index
    %c0_13 = arith.constant 0 : index
    %22 = vector.load %arg7[%c0_12, %c0_13] : memref<128x128xbf16, #tpu.memory_space<vmem>>, vector<128x128xbf16>
    %cst_14 = arith.constant dense<0.000000e+00> : vector<128x128xf32>
    %23 = tpu.matmul %21, %22, %cst_14 {dimension_numbers = #tpu.dot_dimension_numbers<[1], [0], [0], [1], [0, 0, 1, 1], [], []>} : vector<128x128xbf16>, vector<128x128xbf16>, vector<128x128xf32> -> vector<128x128xf32>
    %c0_15 = arith.constant 0 : index
    %c0_16 = arith.constant 0 : index
    %24 = vector.load %arg8[%c0_15, %c0_16] : memref<1x128xf32, #tpu.memory_space<vmem>>, vector<1x128xf32>
    %25 = vector.broadcast %24 : vector<1x128xf32> to vector<128x128xf32>
    %26 = arith.mulf %23, %25 : vector<128x128xf32>
    %c0_17 = arith.constant 0 : index
    %c0_18 = arith.constant 0 : index
    %27 = vector.load %arg9[%c0_17, %c0_18] : memref<1x128xf32, #tpu.memory_space<vmem>>, vector<1x128xf32>
    %28 = vector.broadcast %27 : vector<1x128xf32> to vector<128x128xf32>
    %29 = arith.addf %26, %28 : vector<128x128xf32>
    %30 = arith.index_cast %1 : i32 to index
    %c0_19 = arith.constant 0 : index
    %31 = vector.load %arg10[%30, %c0_19] : memref<128x128xf32, #tpu.memory_space<vmem>>, vector<128x128xf32>
    tpu.vector_store %arg10[%30, %c0_19], %29 {strides = array<i32>} : memref<128x128xf32, #tpu.memory_space<vmem>>, vector<128x128xf32>,
    %c1_i32 = arith.constant 1 : i32
    return
  }
  func.func @transform_0(%arg0: i32) -> (i32, i32) {
    %c0_i32 = arith.constant 0 : i32
    %c0_i32_0 = arith.constant 0 : i32
    return %arg0, %c0_i32 : i32, i32
  }
  func.func @transform_1(%arg0: i32) -> (i32, i32) {
    %c0_i32 = arith.constant 0 : i32
    %c0_i32_0 = arith.constant 0 : i32
    return %arg0, %c0_i32 : i32, i32
  }
  func.func @transform_2(%arg0: i32) -> (i32, i32) {
    %c0_i32 = arith.constant 0 : i32
    %c0_i32_0 = arith.constant 0 : i32
    %c0_i32_1 = arith.constant 0 : i32
    return %c0_i32, %c0_i32_0 : i32, i32
  }
  func.func @transform_3(%arg0: i32) -> (i32, i32) {
    %c0_i32 = arith.constant 0 : i32
    %c0_i32_0 = arith.constant 0 : i32
    %c0_i32_1 = arith.constant 0 : i32
    return %c0_i32, %c0_i32_0 : i32, i32
  }
  func.func @transform_4(%arg0: i32) -> (i32, i32) {
    %c0_i32 = arith.constant 0 : i32
    %c0_i32_0 = arith.constant 0 : i32
    %c0_i32_1 = arith.constant 0 : i32
    return %c0_i32, %c0_i32_0 : i32, i32
  }
  func.func @transform_5(%arg0: i32) -> (i32, i32) {
    %c0_i32 = arith.constant 0 : i32
    %c0_i32_0 = arith.constant 0 : i32
    %c0_i32_1 = arith.constant 0 : i32
    return %c0_i32, %c0_i32_0 : i32, i32
  }
  func.func @transform_6(%arg0: i32) -> (i32, i32) {
    %c0_i32 = arith.constant 0 : i32
    %c0_i32_0 = arith.constant 0 : i32
    %c0_i32_1 = arith.constant 0 : i32
    return %c0_i32, %c0_i32_0 : i32, i32
  }
  func.func @transform_7(%arg0: i32) -> (i32, i32) {
    %c0_i32 = arith.constant 0 : i32
    %c0_i32_0 = arith.constant 0 : i32
    %c0_i32_1 = arith.constant 0 : i32
    return %c0_i32, %c0_i32_0 : i32, i32
  }
  func.func @transform_8(%arg0: i32) -> (i32, i32) {
    %c0_i32 = arith.constant 0 : i32
    %c0_i32_0 = arith.constant 0 : i32
    %c0_i32_1 = arith.constant 0 : i32
    return %c0_i32, %c0_i32_0 : i32, i32
  }
  func.func @transform_9(%arg0: i32) -> (i32, i32) {
    %c0_i32 = arith.constant 0 : i32
    %c0_i32_0 = arith.constant 0 : i32
    return %arg0, %c0_i32 : i32, i32
  }
}

module attributes {stable_mosaic.version = 11 : i64} {
  func.func @kernel(%arg0: i32, %arg1: memref<128x128xbf16, #tpu.memory_space<vmem>>, %arg2: memref<128x128xbf16, #tpu.memory_space<vmem>>, %arg3: memref<128x128xbf16, #tpu.memory_space<vmem>>, %arg4: memref<128x128xbf16, #tpu.memory_space<vmem>>, %arg5: memref<1x128xf32, #tpu.memory_space<vmem>>, %arg6: memref<1x128xf32, #tpu.memory_space<vmem>>, %arg7: memref<128x128xbf16, #tpu.memory_space<vmem>>, %arg8: memref<1x128xf32, #tpu.memory_space<vmem>>, %arg9: memref<1x128xf32, #tpu.memory_space<vmem>>, %arg10: memref<128x128xf32, #tpu.memory_space<vmem>>) attributes {dimension_semantics = [#tpu.dimension_semantics<parallel>], iteration_bounds = array<i64: 1>, scalar_prefetch = 0 : i64, scratch_operands = 0 : i64, tpu.core_type = #tpu.core_type<tc>, window_params = [{transform_indices = @transform_0, window_bounds = array<i64: 128, 128>}, {transform_indices = @transform_1, window_bounds = array<i64: 128, 128>}, {pipeline_mode = #tpu.pipeline_mode<synchronous>, transform_indices = @transform_2, window_bounds = array<i64: 128, 128>}, {pipeline_mode = #tpu.pipeline_mode<synchronous>, transform_indices = @transform_3, window_bounds = array<i64: 128, 128>}, {pipeline_mode = #tpu.pipeline_mode<synchronous>, transform_indices = @transform_4, window_bounds = array<i64: 1, 128>}, {pipeline_mode = #tpu.pipeline_mode<synchronous>, transform_indices = @transform_5, window_bounds = array<i64: 1, 128>}, {pipeline_mode = #tpu.pipeline_mode<synchronous>, transform_indices = @transform_6, window_bounds = array<i64: 128, 128>}, {pipeline_mode = #tpu.pipeline_mode<synchronous>, transform_indices = @transform_7, window_bounds = array<i64: 1, 128>}, {pipeline_mode = #tpu.pipeline_mode<synchronous>, transform_indices = @transform_8, window_bounds = array<i64: 1, 128>}, {transform_indices = @transform_9, window_bounds = array<i64: 128, 128>}]} {
    %c0_i32 = arith.constant 0 : i32
    %c128_i32 = arith.constant 128 : i32
    %0 = arith.muli %c0_i32, %c128_i32 : i32
    %1 = tpu.assume_multiple %0, 128 : i32
    %2 = arith.index_cast %1 : i32 to index
    %c0 = arith.constant 0 : index
    %3 = vector.load %arg1[%2, %c0] : memref<128x128xbf16, #tpu.memory_space<vmem>>, vector<128x128xbf16>
    %c0_0 = arith.constant 0 : index
    %c0_1 = arith.constant 0 : index
    %4 = vector.load %arg3[%c0_0, %c0_1] : memref<128x128xbf16, #tpu.memory_space<vmem>>, vector<128x128xbf16>
    %cst = arith.constant dense<0.000000e+00> : vector<128x128xf32>
    %5 = tpu.matmul %3, %4, %cst {dimension_numbers = #tpu.dot_dimension_numbers<[1], [0], [0], [1], [0, 0, 1, 1], [], []>} : vector<128x128xbf16>, vector<128x128xbf16>, vector<128x128xf32> -> vector<128x128xf32>
    %6 = arith.index_cast %1 : i32 to index
    %c0_2 = arith.constant 0 : index
    %7 = vector.load %arg2[%6, %c0_2] : memref<128x128xbf16, #tpu.memory_space<vmem>>, vector<128x128xbf16>
    %c0_3 = arith.constant 0 : index
    %c0_4 = arith.constant 0 : index
    %8 = vector.load %arg4[%c0_3, %c0_4] : memref<128x128xbf16, #tpu.memory_space<vmem>>, vector<128x128xbf16>
    %cst_5 = arith.constant dense<0.000000e+00> : vector<128x128xf32>
    %9 = tpu.matmul %7, %8, %cst_5 {dimension_numbers = #tpu.dot_dimension_numbers<[1], [0], [0], [1], [0, 0, 1, 1], [], []>} : vector<128x128xbf16>, vector<128x128xbf16>, vector<128x128xf32> -> vector<128x128xf32>
    %10 = arith.addf %5, %9 : vector<128x128xf32>
    %c0_6 = arith.constant 0 : index
    %c0_7 = arith.constant 0 : index
    %11 = vector.load %arg5[%c0_6, %c0_7] : memref<1x128xf32, #tpu.memory_space<vmem>>, vector<1x128xf32>
    %12 = vector.broadcast %11 : vector<1x128xf32> to vector<128x128xf32>
    %13 = arith.mulf %10, %12 : vector<128x128xf32>
    %c0_8 = arith.constant 0 : index
    %c0_9 = arith.constant 0 : index
    %14 = vector.load %arg6[%c0_8, %c0_9] : memref<1x128xf32, #tpu.memory_space<vmem>>, vector<1x128xf32>
    %15 = vector.broadcast %14 : vector<1x128xf32> to vector<128x128xf32>
    %16 = arith.addf %13, %15 : vector<128x128xf32>
    %cst_10 = arith.constant 0.000000e+00 : f32
    %cst_11 = arith.constant 6.000000e+00 : f32
    %17 = vector.broadcast %cst_10 : f32 to vector<128x128xf32>
    %18 = arith.maximumf %17, %16 : vector<128x128xf32>
    %19 = vector.broadcast %cst_11 : f32 to vector<128x128xf32>
    %20 = arith.minimumf %19, %18 : vector<128x128xf32>
    %21 = arith.truncf %20 : vector<128x128xf32> to vector<128x128xbf16>
    %c0_12 = arith.constant 0 : index
    %c0_13 = arith.constant 0 : index
    %22 = vector.load %arg7[%c0_12, %c0_13] : memref<128x128xbf16, #tpu.memory_space<vmem>>, vector<128x128xbf16>
    %cst_14 = arith.constant dense<0.000000e+00> : vector<128x128xf32>
    %23 = tpu.matmul %21, %22, %cst_14 {dimension_numbers = #tpu.dot_dimension_numbers<[1], [0], [0], [1], [0, 0, 1, 1], [], []>} : vector<128x128xbf16>, vector<128x128xbf16>, vector<128x128xf32> -> vector<128x128xf32>
    %c0_15 = arith.constant 0 : index
    %c0_16 = arith.constant 0 : index
    %24 = vector.load %arg8[%c0_15, %c0_16] : memref<1x128xf32, #tpu.memory_space<vmem>>, vector<1x128xf32>
    %25 = vector.broadcast %24 : vector<1x128xf32> to vector<128x128xf32>
    %26 = arith.mulf %23, %25 : vector<128x128xf32>
    %c0_17 = arith.constant 0 : index
    %c0_18 = arith.constant 0 : index
    %27 = vector.load %arg9[%c0_17, %c0_18] : memref<1x128xf32, #tpu.memory_space<vmem>>, vector<1x128xf32>
    %28 = vector.broadcast %27 : vector<1x128xf32> to vector<128x128xf32>
    %29 = arith.addf %26, %28 : vector<128x128xf32>
    %30 = arith.index_cast %1 : i32 to index
    %c0_19 = arith.constant 0 : index
    %31 = vector.load %arg10[%30, %c0_19] : memref<128x128xf32, #tpu.memory_space<vmem>>, vector<128x128xf32>
    tpu.vector_store %arg10[%30, %c0_19], %29 {strides = array<i32>} : memref<128x128xf32, #tpu.memory_space<vmem>>, vector<128x128xf32>,
    %c1_i32 = arith.constant 1 : i32
    return
  }
  func.func @transform_0(%arg0: i32) -> (i32, i32) {
    %c0_i32 = arith.constant 0 : i32
    %c0_i32_0 = arith.constant 0 : i32
    return %arg0, %c0_i32 : i32, i32
  }
  func.func @transform_1(%arg0: i32) -> (i32, i32) {
    %c0_i32 = arith.constant 0 : i32
    %c0_i32_0 = arith.constant 0 : i32
    return %arg0, %c0_i32 : i32, i32
  }
  func.func @transform_2(%arg0: i32) -> (i32, i32) {
    %c0_i32 = arith.constant 0 : i32
    %c0_i32_0 = arith.constant 0 : i32
    %c0_i32_1 = arith.constant 0 : i32
    return %c0_i32, %c0_i32_0 : i32, i32
  }
  func.func @transform_3(%arg0: i32) -> (i32, i32) {
    %c0_i32 = arith.constant 0 : i32
    %c0_i32_0 = arith.constant 0 : i32
    %c0_i32_1 = arith.constant 0 : i32
    return %c0_i32, %c0_i32_0 : i32, i32
  }
  func.func @transform_4(%arg0: i32) -> (i32, i32) {
    %c0_i32 = arith.constant 0 : i32
    %c0_i32_0 = arith.constant 0 : i32
    %c0_i32_1 = arith.constant 0 : i32
    return %c0_i32, %c0_i32_0 : i32, i32
  }
  func.func @transform_5(%arg0: i32) -> (i32, i32) {
    %c0_i32 = arith.constant 0 : i32
    %c0_i32_0 = arith.constant 0 : i32
    %c0_i32_1 = arith.constant 0 : i32
    return %c0_i32, %c0_i32_0 : i32, i32
  }
  func.func @transform_6(%arg0: i32) -> (i32, i32) {
    %c0_i32 = arith.constant 0 : i32
    %c0_i32_0 = arith.constant 0 : i32
    %c0_i32_1 = arith.constant 0 : i32
    return %c0_i32, %c0_i32_0 : i32, i32
  }
  func.func @transform_7(%arg0: i32) -> (i32, i32) {
    %c0_i32 = arith.constant 0 : i32
    %c0_i32_0 = arith.constant 0 : i32
    %c0_i32_1 = arith.constant 0 : i32
    return %c0_i32, %c0_i32_0 : i32, i32
  }
  func.func @transform_8(%arg0: i32) -> (i32, i32) {
    %c0_i32 = arith.constant 0 : i32
    %c0_i32_0 = arith.constant 0 : i32
    %c0_i32_1 = arith.constant 0 : i32
    return %c0_i32, %c0_i32_0 : i32, i32
  }
  func.func @transform_9(%arg0: i32) -> (i32, i32) {
    %c0_i32 = arith.constant 0 : i32
    %c0_i32_0 = arith.constant 0 : i32
    return %arg0, %c0_i32 : i32, i32
  }
}

</mosaic_0001>

<llo_original>
// kernel: tpu_custom_call.1
$region0: #{tpu_custom_call.1}
  #allocation0 [shape = 'u32[]', space=smem, size = 0x4, offset = 0x4, fixed_abs, tag = 'smem constant byte address 0x4 - core index']
  #allocation1 [shape = 'u32[144,128]{1,0:T(1,128)}', space=vmem, size = 0x12000, scoped, tag = 'internal scratch']
  %s0 = inlined_call_operand.hbm [shape: bf16[128,128], index: 0, kind: input, shape index: {}]
  %s1 = inlined_call_operand.hbm [shape: bf16[128,128], index: 1, kind: input, shape index: {}]
  %s2 = inlined_call_operand.hbm [shape: bf16[128,128], index: 2, kind: input, shape index: {}]
  %s3 = inlined_call_operand.hbm [shape: bf16[128,128], index: 3, kind: input, shape index: {}]
  %s4 = inlined_call_operand.vmem [shape: f32[1,128], index: 4, kind: input, shape index: {}]
  %s5 = inlined_call_operand.vmem [shape: f32[1,128], index: 5, kind: input, shape index: {}]
  %s6 = inlined_call_operand.hbm [shape: bf16[128,128], index: 6, kind: input, shape index: {}]
  %s7 = inlined_call_operand.vmem [shape: f32[1,128], index: 7, kind: input, shape index: {}]
  %s8 = inlined_call_operand.vmem [shape: f32[1,128], index: 8, kind: input, shape index: {}]
  %s9 = inlined_call_operand.hbm [shape: f32[128,128], index: 9, kind: output, shape index: {}]
  %s10 = sld [smem:[#allocation0]]
  $region66: #{tpu_custom_call.1} parent=0
    _
  %s12 = ssub.s32 1, %s10
  %s13 = scalar_select 0, %s12, %s10
  $region1: #{tpu_custom_call.1} parent=0
    #allocation2 [shape = 'u8[32768]{0}', space=vmem, size = 0x8000, scoped, tag = 'input window, operand 0, single buffered']
    #allocation3 [shape = 's32[1]{0}', space=sflag, size = 0x4, scoped, tag = 'scoped memory for tpu_custom_call.1']
    #allocation4 [shape = 's32[1]{0}', space=sflag, size = 0x4, scoped, tag = 'scoped memory for tpu_custom_call.1']
    #allocation5 [shape = 'u8[32768]{0}', space=vmem, size = 0x8000, scoped, tag = 'input window, operand 1, single buffered']
    #allocation6 [shape = 's32[1]{0}', space=sflag, size = 0x4, scoped, tag = 'scoped memory for tpu_custom_call.1']
    #allocation7 [shape = 'u8[32768]{0}', space=vmem, size = 0x8000, scoped, tag = 'input window, operand 2, single buffered']
    #allocation8 [shape = 'u8[32768]{0}', space=vmem, size = 0x8000, scoped, tag = 'input window, operand 3, single buffered']
    #allocation9 [shape = 's32[1]{0}', space=sflag, size = 0x4, scoped, tag = 'scoped memory for tpu_custom_call.1']
    #allocation10 [shape = 'u8[32768]{0}', space=vmem, size = 0x8000, scoped, tag = 'input window, operand 6, single buffered']
    #allocation11 [shape = 'u8[65536]{0}', space=vmem, size = 0x10000, scoped, tag = 'output window, operand 0, single buffered']
    %14 = vsyncpa [#allocation3], 0
    %15 = vsyncpa [#allocation6], 0
    %16 = vsyncpa [#allocation9], 0
    %17 = vsyncpa [#allocation4], 0
    // Predicated region
    $region2: #{tpu_custom_call.1} parent=1 // pred_check
      _
    $region3: #{tpu_custom_call.1} parent=1 // pred_check_branch
      %19 = sbr.rel (0) target = $region5
    $region4: #{tpu_custom_call.1} parent=1 // pred_region
      %s21 = ssub.s32 1024, 1024
      %22 = vsyncadd [#allocation3], %s21
      %s23 = sshll.u32 [#allocation2], 4
      %s24 = int_to_ptr.vmem [resolvable:$true] %s23
      %29 = dma.hbm_to_vmem [thread:$0]  %s0, 1024, %s24, [#allocation3], 64, 64, 4
    $region5: #{tpu_custom_call.1} parent=1 // pred_fallthru
      _
    // Predicated region
    $region6: #{tpu_custom_call.1} parent=1 // pred_check
      _
    $region7: #{tpu_custom_call.1} parent=1 // pred_check_branch
      %31 = sbr.rel (0) target = $region9
    $region8: #{tpu_custom_call.1} parent=1 // pred_region
      %s33 = ssub.s32 1024, 1024
      %34 = vsyncadd [#allocation6], %s33
      %s35 = sshll.u32 [#allocation5], 4
      %s36 = int_to_ptr.vmem [resolvable:$true] %s35
      %41 = dma.hbm_to_vmem [thread:$0]  %s1, 1024, %s36, [#allocation6], 64, 64, 4
    $region9: #{tpu_custom_call.1} parent=1 // pred_fallthru
      _
    // Predicated region
    $region10: #{tpu_custom_call.1} parent=1 // pred_check
      _
    $region11: #{tpu_custom_call.1} parent=1 // pred_check_branch
      %43 = sbr.rel (0) target = $region13
    $region12: #{tpu_custom_call.1} parent=1 // pred_region
      %s45 = ssub.s32 1024, 1024
      %46 = vsyncadd [#allocation6], %s45
      %s47 = sshll.u32 [#allocation7], 4
      %s48 = int_to_ptr.vmem [resolvable:$true] %s47
      %53 = dma.hbm_to_vmem [thread:$0]  %s2, 1024, %s48, [#allocation6], 64, 64, 4
    $region13: #{tpu_custom_call.1} parent=1 // pred_fallthru
      _
    // Predicated region
    $region14: #{tpu_custom_call.1} parent=1 // pred_check
      _
    $region15: #{tpu_custom_call.1} parent=1 // pred_check_branch
      %55 = sbr.rel (0) target = $region17
    $region16: #{tpu_custom_call.1} parent=1 // pred_region
      %s57 = ssub.s32 1024, 1024
      %58 = vsyncadd [#allocation9], %s57
      %s59 = sshll.u32 [#allocation8], 4
      %s60 = int_to_ptr.vmem [resolvable:$true] %s59
      %65 = dma.hbm_to_vmem [thread:$0]  %s3, 1024, %s60, [#allocation9], 64, 64, 4
    $region17: #{tpu_custom_call.1} parent=1 // pred_fallthru
      _
    // Predicated region
    $region18: #{tpu_custom_call.1} parent=1 // pred_check
      _
    $region19: #{tpu_custom_call.1} parent=1 // pred_check_branch
      %67 = sbr.rel (0) target = $region21
    $region20: #{tpu_custom_call.1} parent=1 // pred_region
      _
    $region21: #{tpu_custom_call.1} parent=1 // pred_fallthru
      _
    // Predicated region
    $region22: #{tpu_custom_call.1} parent=1 // pred_check
      _
    $region23: #{tpu_custom_call.1} parent=1 // pred_check_branch
      %69 = sbr.rel (0) target = $region25
    $region24: #{tpu_custom_call.1} parent=1 // pred_region
      _
    $region25: #{tpu_custom_call.1} parent=1 // pred_fallthru
      _
    // Predicated region
    $region26: #{tpu_custom_call.1} parent=1 // pred_check
      _
    $region27: #{tpu_custom_call.1} parent=1 // pred_check_branch
      %71 = sbr.rel (0) target = $region29
    $region28: #{tpu_custom_call.1} parent=1 // pred_region
      %s73 = ssub.s32 1024, 1024
      %74 = vsyncadd [#allocation9], %s73
      %s75 = sshll.u32 [#allocation10], 4
      %s76 = int_to_ptr.vmem [resolvable:$true] %s75
      %81 = dma.hbm_to_vmem [thread:$0]  %s6, 1024, %s76, [#allocation9], 64, 64, 4
    $region29: #{tpu_custom_call.1} parent=1 // pred_fallthru
      _
    // Predicated region
    $region30: #{tpu_custom_call.1} parent=1 // pred_check
      _
    $region31: #{tpu_custom_call.1} parent=1 // pred_check_branch
      %83 = sbr.rel (0) target = $region33
    $region32: #{tpu_custom_call.1} parent=1 // pred_region
      _
    $region33: #{tpu_custom_call.1} parent=1 // pred_fallthru
      _
    // Predicated region
    $region34: #{tpu_custom_call.1} parent=1 // pred_check
      _
    $region35: #{tpu_custom_call.1} parent=1 // pred_check_branch
      %85 = sbr.rel (0) target = $region37
    $region36: #{tpu_custom_call.1} parent=1 // pred_region
      _
    $region37: #{tpu_custom_call.1} parent=1 // pred_fallthru
      _
    // Predicated region
    $region38: #{tpu_custom_call.1} parent=1 // pred_check
      _
    $region39: #{tpu_custom_call.1} parent=1 // pred_check_branch
      %87 = sbr.rel (0) target = $region41
    $region40: #{tpu_custom_call.1} parent=1 // pred_region
      %88 = dma.done [#allocation3], 1024
    $region41: #{tpu_custom_call.1} parent=1 // pred_fallthru
      _
    // Predicated region
    $region42: #{tpu_custom_call.1} parent=1 // pred_check
      _
    $region43: #{tpu_custom_call.1} parent=1 // pred_check_branch
      %90 = sbr.rel (0) target = $region45
    $region44: #{tpu_custom_call.1} parent=1 // pred_region
      %91 = dma.done [#allocation6], 1024
    $region45: #{tpu_custom_call.1} parent=1 // pred_fallthru
      _
    // Predicated region
    $region46: #{tpu_custom_call.1} parent=1 // pred_check
      _
    $region47: #{tpu_custom_call.1} parent=1 // pred_check_branch
      %93 = sbr.rel (0) target = $region49
    $region48: #{tpu_custom_call.1} parent=1 // pred_region
      %94 = dma.done [#allocation6], 1024
    $region49: #{tpu_custom_call.1} parent=1 // pred_fallthru
      _
    // Predicated region
    $region50: #{tpu_custom_call.1} parent=1 // pred_check
      _
    $region51: #{tpu_custom_call.1} parent=1 // pred_check_branch
      %96 = sbr.rel (0) target = $region53
    $region52: #{tpu_custom_call.1} parent=1 // pred_region
      %97 = dma.done [#allocation9], 1024
    $region53: #{tpu_custom_call.1} parent=1 // pred_fallthru
      _
    // Predicated region
    $region54: #{tpu_custom_call.1} parent=1 // pred_check
      _
    $region55: #{tpu_custom_call.1} parent=1 // pred_check_branch
      %99 = sbr.rel (0) target = $region57
    $region56: #{tpu_custom_call.1} parent=1 // pred_region
      %100 = dma.done [#allocation9], 1024
    $region57: #{tpu_custom_call.1} parent=1 // pred_fallthru
      _
    %v102 = vld [vmem:[#allocation2] sm:$0xf]
    %v103 = vld [vmem:[#allocation2 + $0x4] sm:$0xf]
    %v104 = vld [vmem:[#allocation2 + $0x8] sm:$0xf]
    %v105 = vld [vmem:[#allocation2 + $0xc] sm:$0xf]
    %v106 = vld [vmem:[#allocation2 + $0x10] sm:$0xf]
    %v107 = vld [vmem:[#allocation2 + $0x14] sm:$0xf]
    %v108 = vld [vmem:[#allocation2 + $0x18] sm:$0xf]
    %v109 = vld [vmem:[#allocation2 + $0x1c] sm:$0xf]
    %v110 = vld [vmem:[#allocation2 + $0x20] sm:$0xf]
    %v111 = vld [vmem:[#allocation2 + $0x24] sm:$0xf]
    %v112 = vld [vmem:[#allocation2 + $0x28] sm:$0xf]
    %v113 = vld [vmem:[#allocation2 + $0x2c] sm:$0xf]
    %v114 = vld [vmem:[#allocation2 + $0x30] sm:$0xf]
    %v115 = vld [vmem:[#allocation2 + $0x34] sm:$0xf]
    %v116 = vld [vmem:[#allocation2 + $0x38] sm:$0xf]
    %v117 = vld [vmem:[#allocation2 + $0x3c] sm:$0xf]
    %v118 = vld [vmem:[#allocation7] sm:$0xf]
    %v119 = vld [vmem:[#allocation7 + $0x4] sm:$0xf]
    %v120 = vld [vmem:[#allocation7 + $0x8] sm:$0xf]
    %v121 = vld [vmem:[#allocation7 + $0xc] sm:$0xf]
    %v122 = vld [vmem:[#allocation7 + $0x10] sm:$0xf]
    %v123 = vld [vmem:[#allocation7 + $0x14] sm:$0xf]
    %v124 = vld [vmem:[#allocation7 + $0x18] sm:$0xf]
    %v125 = vld [vmem:[#allocation7 + $0x1c] sm:$0xf]
    %v126 = vld [vmem:[#allocation7 + $0x20] sm:$0xf]
    %v127 = vld [vmem:[#allocation7 + $0x24] sm:$0xf]
    %v128 = vld [vmem:[#allocation7 + $0x28] sm:$0xf]
    %v129 = vld [vmem:[#allocation7 + $0x2c] sm:$0xf]
    %v130 = vld [vmem:[#allocation7 + $0x30] sm:$0xf]
    %v131 = vld [vmem:[#allocation7 + $0x34] sm:$0xf]
    %v132 = vld [vmem:[#allocation7 + $0x38] sm:$0xf]
    %v133 = vld [vmem:[#allocation7 + $0x3c] sm:$0xf]
    %v134 = vld [vmem:[#allocation5] sm:$0xf]
    %v135 = vld [vmem:[#allocation5 + $0x4] sm:$0xf]
    %v136 = vld [vmem:[#allocation5 + $0x8] sm:$0xf]
    %v137 = vld [vmem:[#allocation5 + $0xc] sm:$0xf]
    %v138 = vld [vmem:[#allocation5 + $0x10] sm:$0xf]
    %v139 = vld [vmem:[#allocation5 + $0x14] sm:$0xf]
    %v140 = vld [vmem:[#allocation5 + $0x18] sm:$0xf]
    %v141 = vld [vmem:[#allocation5 + $0x1c] sm:$0xf]
    %v142 = vld [vmem:[#allocation5 + $0x20] sm:$0xf]
    %v143 = vld [vmem:[#allocation5 + $0x24] sm:$0xf]
    %v144 = vld [vmem:[#allocation5 + $0x28] sm:$0xf]
    %v145 = vld [vmem:[#allocation5 + $0x2c] sm:$0xf]
    %v146 = vld [vmem:[#allocation5 + $0x30] sm:$0xf]
    %v147 = vld [vmem:[#allocation5 + $0x34] sm:$0xf]
    %v148 = vld [vmem:[#allocation5 + $0x38] sm:$0xf]
    %v149 = vld [vmem:[#allocation5 + $0x3c] sm:$0xf]
    %v150 = vld [vmem:[#allocation8] sm:$0xf]
    %v151 = vld [vmem:[#allocation8 + $0x4] sm:$0xf]
    %v152 = vld [vmem:[#allocation8 + $0x8] sm:$0xf]
    %v153 = vld [vmem:[#allocation8 + $0xc] sm:$0xf]
    %v154 = vld [vmem:[#allocation8 + $0x10] sm:$0xf]
    %v155 = vld [vmem:[#allocation8 + $0x14] sm:$0xf]
    %v156 = vld [vmem:[#allocation8 + $0x18] sm:$0xf]
    %v157 = vld [vmem:[#allocation8 + $0x1c] sm:$0xf]
    %v158 = vld [vmem:[#allocation8 + $0x20] sm:$0xf]
    %v159 = vld [vmem:[#allocation8 + $0x24] sm:$0xf]
    %v160 = vld [vmem:[#allocation8 + $0x28] sm:$0xf]
    %v161 = vld [vmem:[#allocation8 + $0x2c] sm:$0xf]
    %v162 = vld [vmem:[#allocation8 + $0x30] sm:$0xf]
    %v163 = vld [vmem:[#allocation8 + $0x34] sm:$0xf]
    %v164 = vld [vmem:[#allocation8 + $0x38] sm:$0xf]
    %v165 = vld [vmem:[#allocation8 + $0x3c] sm:$0xf]
    %v182 = vunpack.c.l.b16 %v134
    %v183 = vunpack.c.l.b16 %v135
    %v184 = vunpack.c.l.b16 %v136
    %v185 = vunpack.c.l.b16 %v137
    %v186 = vunpack.c.l.b16 %v138
    %v187 = vunpack.c.l.b16 %v139
    %v188 = vunpack.c.l.b16 %v140
    %v189 = vunpack.c.l.b16 %v141
    %v190 = vunpack.c.l.b16 %v142
    %v191 = vunpack.c.l.b16 %v143
    %v192 = vunpack.c.l.b16 %v144
    %v193 = vunpack.c.l.b16 %v145
    %v194 = vunpack.c.l.b16 %v146
    %v195 = vunpack.c.l.b16 %v147
    %v196 = vunpack.c.l.b16 %v148
    %v197 = vunpack.c.l.b16 %v149
    %v198 = vpack.c.b16 %v183, %v182
    %v199 = vpack.c.b16 %v185, %v184
    %v200 = vpack.c.b16 %v187, %v186
    %v201 = vpack.c.b16 %v189, %v188
    %v202 = vpack.c.b16 %v191, %v190
    %v203 = vpack.c.b16 %v193, %v192
    %v204 = vpack.c.b16 %v195, %v194
    %v205 = vpack.c.b16 %v197, %v196
    %v230 = vunpack.c.l.b16 %v150
    %v231 = vunpack.c.l.b16 %v151
    %v232 = vunpack.c.l.b16 %v152
    %v233 = vunpack.c.l.b16 %v153
    %v234 = vunpack.c.l.b16 %v154
    %v235 = vunpack.c.l.b16 %v155
    %v236 = vunpack.c.l.b16 %v156
    %v237 = vunpack.c.l.b16 %v157
    %v238 = vunpack.c.l.b16 %v158
    %v239 = vunpack.c.l.b16 %v159
    %v240 = vunpack.c.l.b16 %v160
    %v241 = vunpack.c.l.b16 %v161
    %v242 = vunpack.c.l.b16 %v162
    %v243 = vunpack.c.l.b16 %v163
    %v244 = vunpack.c.l.b16 %v164
    %v245 = vunpack.c.l.b16 %v165
    %v246 = vpack.c.b16 %v231, %v230
    %v247 = vpack.c.b16 %v233, %v232
    %v248 = vpack.c.b16 %v235, %v234
    %v249 = vpack.c.b16 %v237, %v236
    %v250 = vpack.c.b16 %v239, %v238
    %v251 = vpack.c.b16 %v241, %v240
    %v252 = vpack.c.b16 %v243, %v242
    %v253 = vpack.c.b16 %v245, %v244
    %262 = vmatprep.subr.bf16.mxu0 0
    %263 = vmatpush1.bf16.msra.mxu0 %v246
    %264 = vmatprep.subr.bf16.mxu0 0
    %265 = vmatpush1.bf16.msra.mxu0 %v247
    %266 = vmatprep.subr.bf16.mxu0 0
    %267 = vmatpush1.bf16.msra.mxu0 %v248
    %268 = vmatprep.subr.bf16.mxu0 0
    %269 = vmatpush1.bf16.msra.mxu0 %v249
    %270 = vmatprep.subr.bf16.mxu0 0
    %271 = vmatpush1.bf16.msra.mxu0 %v250
    %272 = vmatprep.subr.bf16.mxu0 0
    %273 = vmatpush1.bf16.msra.mxu0 %v251
    %274 = vmatprep.subr.bf16.mxu0 0
    %275 = vmatpush1.bf16.msra.mxu0 %v252
    %276 = vmatprep.subr.bf16.mxu0 0
    %277 = vmatpush1.bf16.msra.mxu0 %v253
    %278 = vmatprep.subr.bf16.mxu0 0
    %279 = vmatpush1.bf16.msra.mxu0 0
    %280 = vmatprep.subr.bf16.mxu0 0
    %281 = vmatpush1.bf16.msra.mxu0 0
    %282 = vmatprep.subr.bf16.mxu0 0
    %283 = vmatpush1.bf16.msra.mxu0 0
    %284 = vmatprep.subr.bf16.mxu0 0
    %285 = vmatpush1.bf16.msra.mxu0 0
    %286 = vmatprep.subr.bf16.mxu0 0
    %287 = vmatpush1.bf16.msra.mxu0 0
    %288 = vmatprep.subr.bf16.mxu0 0
    %289 = vmatpush1.bf16.msra.mxu0 0
    %290 = vmatprep.subr.bf16.mxu0 0
    %291 = vmatpush1.bf16.msra.mxu0 0
    %292 = vmatprep.subr.bf16.mxu0 0
    %293 = vmatpush1.bf16.msra.mxu0 0
    %294 = vmatprep.mubr.bf16.mxu0 0
    %295 = vmatmul.mubr.bf16.gmra.mrb[0].mxu0 %v198
    %v296 = vpop.f32.mrb[0].mxu0
    %v297 = vadd.f32 0.0, %v296
    %v298 = vpop.f32.mrb[0].mxu0
    %v299 = vpop.f32.mrb[0].mxu0
    %v300 = vadd.f32 0.0, %v299
    %v301 = vpop.f32.mrb[0].mxu0
    %302 = vmatprep.mubr.bf16.mxu0 0
    %303 = vmatmul.mubr.bf16.gmra.mrb[0].mxu0 %v199
    %v304 = vpop.f32.mrb[0].mxu0
    %v305 = vadd.f32 0.0, %v304
    %v306 = vpop.f32.mrb[0].mxu0
    %v307 = vpop.f32.mrb[0].mxu0
    %v308 = vadd.f32 0.0, %v307
    %v309 = vpop.f32.mrb[0].mxu0
    %310 = vmatprep.mubr.bf16.mxu0 0
    %311 = vmatmul.mubr.bf16.gmra.mrb[0].mxu0 %v200
    %v312 = vpop.f32.mrb[0].mxu0
    %v313 = vadd.f32 0.0, %v312
    %v314 = vpop.f32.mrb[0].mxu0
    %v315 = vpop.f32.mrb[0].mxu0
    %v316 = vadd.f32 0.0, %v315
    %v317 = vpop.f32.mrb[0].mxu0
    %318 = vmatprep.mubr.bf16.mxu0 0
    %319 = vmatmul.mubr.bf16.gmra.mrb[0].mxu0 %v201
    %v320 = vpop.f32.mrb[0].mxu0
    %v321 = vadd.f32 0.0, %v320
    %v322 = vpop.f32.mrb[0].mxu0
    %v323 = vpop.f32.mrb[0].mxu0
    %v324 = vadd.f32 0.0, %v323
    %v325 = vpop.f32.mrb[0].mxu0
    %326 = vmatprep.mubr.bf16.mxu0 0
    %327 = vmatmul.mubr.bf16.gmra.mrb[0].mxu0 %v202
    %v328 = vpop.f32.mrb[0].mxu0
    %v329 = vadd.f32 0.0, %v328
    %v330 = vpop.f32.mrb[0].mxu0
    %v331 = vpop.f32.mrb[0].mxu0
    %v332 = vadd.f32 0.0, %v331
    %v333 = vpop.f32.mrb[0].mxu0
    %334 = vmatprep.mubr.bf16.mxu0 0
    %335 = vmatmul.mubr.bf16.gmra.mrb[0].mxu0 %v203
    %v336 = vpop.f32.mrb[0].mxu0
    %v337 = vadd.f32 0.0, %v336
    %v338 = vpop.f32.mrb[0].mxu0
    %v339 = vpop.f32.mrb[0].mxu0
    %v340 = vadd.f32 0.0, %v339
    %v341 = vpop.f32.mrb[0].mxu0
    %342 = vmatprep.mubr.bf16.mxu0 0
    %343 = vmatmul.mubr.bf16.gmra.mrb[0].mxu0 %v204
    %v344 = vpop.f32.mrb[0].mxu0
    %v345 = vadd.f32 0.0, %v344
    %v346 = vpop.f32.mrb[0].mxu0
    %v347 = vpop.f32.mrb[0].mxu0
    %v348 = vadd.f32 0.0, %v347
    %v349 = vpop.f32.mrb[0].mxu0
    %350 = vmatprep.mubr.bf16.mxu0 0
    %351 = vmatmul.mubr.bf16.gmra.mrb[0].mxu0 %v205
    %v352 = vpop.f32.mrb[0].mxu0
    %v353 = vadd.f32 0.0, %v352
    %v354 = vpop.f32.mrb[0].mxu0
    %v355 = vpop.f32.mrb[0].mxu0
    %v356 = vadd.f32 0.0, %v355
    %v357 = vpop.f32.mrb[0].mxu0
    %358 = vdwg.mxu0
    %v375 = vunpack.c.l.b16 %v102
    %v376 = vunpack.c.l.b16 %v103
    %v377 = vunpack.c.l.b16 %v104
    %v378 = vunpack.c.l.b16 %v105
    %v379 = vunpack.c.l.b16 %v106
    %v380 = vunpack.c.l.b16 %v107
    %v381 = vunpack.c.l.b16 %v108
    %v382 = vunpack.c.l.b16 %v109
    %v383 = vunpack.c.l.b16 %v110
    %v384 = vunpack.c.l.b16 %v111
    %v385 = vunpack.c.l.b16 %v112
    %v386 = vunpack.c.l.b16 %v113
    %v387 = vunpack.c.l.b16 %v114
    %v388 = vunpack.c.l.b16 %v115
    %v389 = vunpack.c.l.b16 %v116
    %v390 = vunpack.c.l.b16 %v117
    %v391 = vpack.c.b16 %v376, %v375
    %v392 = vpack.c.b16 %v378, %v377
    %v393 = vpack.c.b16 %v380, %v379
    %v394 = vpack.c.b16 %v382, %v381
    %v395 = vpack.c.b16 %v384, %v383
    %v396 = vpack.c.b16 %v386, %v385
    %v397 = vpack.c.b16 %v388, %v387
    %v398 = vpack.c.b16 %v390, %v389
    %v423 = vunpack.c.l.b16 %v118
    %v424 = vunpack.c.l.b16 %v119
    %v425 = vunpack.c.l.b16 %v120
    %v426 = vunpack.c.l.b16 %v121
    %v427 = vunpack.c.l.b16 %v122
    %v428 = vunpack.c.l.b16 %v123
    %v429 = vunpack.c.l.b16 %v124
    %v430 = vunpack.c.l.b16 %v125
    %v431 = vunpack.c.l.b16 %v126
    %v432 = vunpack.c.l.b16 %v127
    %v433 = vunpack.c.l.b16 %v128
    %v434 = vunpack.c.l.b16 %v129
    %v435 = vunpack.c.l.b16 %v130
    %v436 = vunpack.c.l.b16 %v131
    %v437 = vunpack.c.l.b16 %v132
    %v438 = vunpack.c.l.b16 %v133
    %v439 = vpack.c.b16 %v424, %v423
    %v440 = vpack.c.b16 %v426, %v425
    %v441 = vpack.c.b16 %v428, %v427
    %v442 = vpack.c.b16 %v430, %v429
    %v443 = vpack.c.b16 %v432, %v431
    %v444 = vpack.c.b16 %v434, %v433
    %v445 = vpack.c.b16 %v436, %v435
    %v446 = vpack.c.b16 %v438, %v437
    %455 = vmatprep.subr.bf16.mxu0 0
    %456 = vmatpush1.bf16.msra.mxu0 %v439
    %457 = vmatprep.subr.bf16.mxu0 0
    %458 = vmatpush1.bf16.msra.mxu0 %v440
    %459 = vmatprep.subr.bf16.mxu0 0
    %460 = vmatpush1.bf16.msra.mxu0 %v441
    %461 = vmatprep.subr.bf16.mxu0 0
    %462 = vmatpush1.bf16.msra.mxu0 %v442
    %463 = vmatprep.subr.bf16.mxu0 0
    %464 = vmatpush1.bf16.msra.mxu0 %v443
    %465 = vmatprep.subr.bf16.mxu0 0
    %466 = vmatpush1.bf16.msra.mxu0 %v444
    %467 = vmatprep.subr.bf16.mxu0 0
    %468 = vmatpush1.bf16.msra.mxu0 %v445
    %469 = vmatprep.subr.bf16.mxu0 0
    %470 = vmatpush1.bf16.msra.mxu0 %v446
    %471 = vmatprep.subr.bf16.mxu0 0
    %472 = vmatpush1.bf16.msra.mxu0 0
    %473 = vmatprep.subr.bf16.mxu0 0
    %474 = vmatpush1.bf16.msra.mxu0 0
    %475 = vmatprep.subr.bf16.mxu0 0
    %476 = vmatpush1.bf16.msra.mxu0 0
    %477 = vmatprep.subr.bf16.mxu0 0
    %478 = vmatpush1.bf16.msra.mxu0 0
    %479 = vmatprep.subr.bf16.mxu0 0
    %480 = vmatpush1.bf16.msra.mxu0 0
    %481 = vmatprep.subr.bf16.mxu0 0
    %482 = vmatpush1.bf16.msra.mxu0 0
    %483 = vmatprep.subr.bf16.mxu0 0
    %484 = vmatpush1.bf16.msra.mxu0 0
    %485 = vmatprep.subr.bf16.mxu0 0
    %486 = vmatpush1.bf16.msra.mxu0 0
    %487 = vmatprep.mubr.bf16.mxu0 0
    %488 = vmatmul.mubr.bf16.gmra.mrb[0].mxu0 %v391
    %v489 = vpop.f32.mrb[0].mxu0
    %v490 = vadd.f32 %v297, %v489
    %v491 = vpop.f32.mrb[0].mxu0
    %v492 = vpop.f32.mrb[0].mxu0
    %v493 = vadd.f32 %v300, %v492
    %v494 = vpop.f32.mrb[0].mxu0
    %495 = vmatprep.mubr.bf16.mxu0 0
    %496 = vmatmul.mubr.bf16.gmra.mrb[0].mxu0 %v392
    %v497 = vpop.f32.mrb[0].mxu0
    %v498 = vadd.f32 %v305, %v497
    %v499 = vpop.f32.mrb[0].mxu0
    %v500 = vpop.f32.mrb[0].mxu0
    %v501 = vadd.f32 %v308, %v500
    %v502 = vpop.f32.mrb[0].mxu0
    %503 = vmatprep.mubr.bf16.mxu0 0
    %504 = vmatmul.mubr.bf16.gmra.mrb[0].mxu0 %v393
    %v505 = vpop.f32.mrb[0].mxu0
    %v506 = vadd.f32 %v313, %v505
    %v507 = vpop.f32.mrb[0].mxu0
    %v508 = vpop.f32.mrb[0].mxu0
    %v509 = vadd.f32 %v316, %v508
    %v510 = vpop.f32.mrb[0].mxu0
    %511 = vmatprep.mubr.bf16.mxu0 0
    %512 = vmatmul.mubr.bf16.gmra.mrb[0].mxu0 %v394
    %v513 = vpop.f32.mrb[0].mxu0
    %v514 = vadd.f32 %v321, %v513
    %v515 = vpop.f32.mrb[0].mxu0
    %v516 = vpop.f32.mrb[0].mxu0
    %v517 = vadd.f32 %v324, %v516
    %v518 = vpop.f32.mrb[0].mxu0
    %519 = vmatprep.mubr.bf16.mxu0 0
    %520 = vmatmul.mubr.bf16.gmra.mrb[0].mxu0 %v395
    %v521 = vpop.f32.mrb[0].mxu0
    %v522 = vadd.f32 %v329, %v521
    %v523 = vpop.f32.mrb[0].mxu0
    %v524 = vpop.f32.mrb[0].mxu0
    %v525 = vadd.f32 %v332, %v524
    %v526 = vpop.f32.mrb[0].mxu0
    %527 = vmatprep.mubr.bf16.mxu0 0
    %528 = vmatmul.mubr.bf16.gmra.mrb[0].mxu0 %v396
    %v529 = vpop.f32.mrb[0].mxu0
    %v530 = vadd.f32 %v337, %v529
    %v531 = vpop.f32.mrb[0].mxu0
    %v532 = vpop.f32.mrb[0].mxu0
    %v533 = vadd.f32 %v340, %v532
    %v534 = vpop.f32.mrb[0].mxu0
    %535 = vmatprep.mubr.bf16.mxu0 0
    %536 = vmatmul.mubr.bf16.gmra.mrb[0].mxu0 %v397
    %v537 = vpop.f32.mrb[0].mxu0
    %v538 = vadd.f32 %v345, %v537
    %v539 = vpop.f32.mrb[0].mxu0
    %v540 = vpop.f32.mrb[0].mxu0
    %v541 = vadd.f32 %v348, %v540
    %v542 = vpop.f32.mrb[0].mxu0
    %543 = vmatprep.mubr.bf16.mxu0 0
    %544 = vmatmul.mubr.bf16.gmra.mrb[0].mxu0 %v398
    %v545 = vpop.f32.mrb[0].mxu0
    %v546 = vadd.f32 %v353, %v545
    %v547 = vpop.f32.mrb[0].mxu0
    %v548 = vpop.f32.mrb[0].mxu0
    %v549 = vadd.f32 %v356, %v548
    %v550 = vpop.f32.mrb[0].mxu0
    %551 = vdwg.mxu0
    %v552 = vld [vmem:[%s4] sm:$0x1]
    %v554 = vlaneseq
    %v555 = vshrl.u32 %v554, 7
    %v556 = vsub.s32 0, %v555
    %v557 = vrot.slane %v552, %v556
    %v559 = vmul.f32 %v490, %v557
    %v560 = vmul.f32 %v493, %v557
    %v561 = vmul.f32 %v498, %v557
    %v562 = vmul.f32 %v501, %v557
    %v563 = vmul.f32 %v506, %v557
    %v564 = vmul.f32 %v509, %v557
    %v565 = vmul.f32 %v514, %v557
    %v566 = vmul.f32 %v517, %v557
    %v567 = vmul.f32 %v522, %v557
    %v568 = vmul.f32 %v525, %v557
    %v569 = vmul.f32 %v530, %v557
    %v570 = vmul.f32 %v533, %v557
    %v571 = vmul.f32 %v538, %v557
    %v572 = vmul.f32 %v541, %v557
    %v573 = vmul.f32 %v546, %v557
    %v574 = vmul.f32 %v549, %v557
    %v575 = vld [vmem:[%s5] sm:$0x1]
    %v577 = vlaneseq
    %v578 = vshrl.u32 %v577, 7
    %v579 = vsub.s32 0, %v578
    %v580 = vrot.slane %v575, %v579
    %v582 = vadd.f32 %v559, %v580
    %v583 = vadd.f32 %v560, %v580
    %v584 = vadd.f32 %v561, %v580
    %v585 = vadd.f32 %v562, %v580
    %v586 = vadd.f32 %v563, %v580
    %v587 = vadd.f32 %v564, %v580
    %v588 = vadd.f32 %v565, %v580
    %v589 = vadd.f32 %v566, %v580
    %v590 = vadd.f32 %v567, %v580
    %v591 = vadd.f32 %v568, %v580
    %v592 = vadd.f32 %v569, %v580
    %v593 = vadd.f32 %v570, %v580
    %v594 = vadd.f32 %v571, %v580
    %v595 = vadd.f32 %v572, %v580
    %v596 = vadd.f32 %v573, %v580
    %v597 = vadd.f32 %v574, %v580
    %v598 = vmax.f32 %v582, 0.0
    %v599 = vmax.f32 %v583, 0.0
    %v600 = vmax.f32 %v584, 0.0
    %v601 = vmax.f32 %v585, 0.0
    %v602 = vmax.f32 %v586, 0.0
    %v603 = vmax.f32 %v587, 0.0
    %v604 = vmax.f32 %v588, 0.0
    %v605 = vmax.f32 %v589, 0.0
    %v606 = vmax.f32 %v590, 0.0
    %v607 = vmax.f32 %v591, 0.0
    %v608 = vmax.f32 %v592, 0.0
    %v609 = vmax.f32 %v593, 0.0
    %v610 = vmax.f32 %v594, 0.0
    %v611 = vmax.f32 %v595, 0.0
    %v612 = vmax.f32 %v596, 0.0
    %v613 = vmax.f32 %v597, 0.0
    %v614 = vmin.f32 %v598, 6.0
    %v615 = vmin.f32 %v599, 6.0
    %v616 = vmin.f32 %v600, 6.0
    %v617 = vmin.f32 %v601, 6.0
    %v618 = vmin.f32 %v602, 6.0
    %v619 = vmin.f32 %v603, 6.0
    %v620 = vmin.f32 %v604, 6.0
    %v621 = vmin.f32 %v605, 6.0
    %v622 = vmin.f32 %v606, 6.0
    %v623 = vmin.f32 %v607, 6.0
    %v624 = vmin.f32 %v608, 6.0
    %v625 = vmin.f32 %v609, 6.0
    %v626 = vmin.f32 %v610, 6.0
    %v627 = vmin.f32 %v611, 6.0
    %v628 = vmin.f32 %v612, 6.0
    %v629 = vmin.f32 %v613, 6.0
    %v630 = vpack.c.bf16 %v615, %v614
    %v631 = vpack.c.bf16 %v617, %v616
    %v632 = vpack.c.bf16 %v619, %v618
    %v633 = vpack.c.bf16 %v621, %v620
    %v634 = vpack.c.bf16 %v623, %v622
    %v635 = vpack.c.bf16 %v625, %v624
    %v636 = vpack.c.bf16 %v627, %v626
    %v637 = vpack.c.bf16 %v629, %v628
    %v638 = vld [vmem:[#allocation10] sm:$0xf]
    %v639 = vld [vmem:[#allocation10 + $0x4] sm:$0xf]
    %v640 = vld [vmem:[#allocation10 + $0x8] sm:$0xf]
    %v641 = vld [vmem:[#allocation10 + $0xc] sm:$0xf]
    %v642 = vld [vmem:[#allocation10 + $0x10] sm:$0xf]
    %v643 = vld [vmem:[#allocation10 + $0x14] sm:$0xf]
    %v644 = vld [vmem:[#allocation10 + $0x18] sm:$0xf]
    %v645 = vld [vmem:[#allocation10 + $0x1c] sm:$0xf]
    %v646 = vld [vmem:[#allocation10 + $0x20] sm:$0xf]
    %v647 = vld [vmem:[#allocation10 + $0x24] sm:$0xf]
    %v648 = vld [vmem:[#allocation10 + $0x28] sm:$0xf]
    %v649 = vld [vmem:[#allocation10 + $0x2c] sm:$0xf]
    %v650 = vld [vmem:[#allocation10 + $0x30] sm:$0xf]
    %v651 = vld [vmem:[#allocation10 + $0x34] sm:$0xf]
    %v652 = vld [vmem:[#allocation10 + $0x38] sm:$0xf]
    %v653 = vld [vmem:[#allocation10 + $0x3c] sm:$0xf]
    %v670 = vunpack.c.l.b16 %v638
    %v671 = vunpack.c.l.b16 %v639
    %v672 = vunpack.c.l.b16 %v640
    %v673 = vunpack.c.l.b16 %v641
    %v674 = vunpack.c.l.b16 %v642
    %v675 = vunpack.c.l.b16 %v643
    %v676 = vunpack.c.l.b16 %v644
    %v677 = vunpack.c.l.b16 %v645
    %v678 = vunpack.c.l.b16 %v646
    %v679 = vunpack.c.l.b16 %v647
    %v680 = vunpack.c.l.b16 %v648
    %v681 = vunpack.c.l.b16 %v649
    %v682 = vunpack.c.l.b16 %v650
    %v683 = vunpack.c.l.b16 %v651
    %v684 = vunpack.c.l.b16 %v652
    %v685 = vunpack.c.l.b16 %v653
    %v686 = vpack.c.b16 %v671, %v670
    %v687 = vpack.c.b16 %v673, %v672
    %v688 = vpack.c.b16 %v675, %v674
    %v689 = vpack.c.b16 %v677, %v676
    %v690 = vpack.c.b16 %v679, %v678
    %v691 = vpack.c.b16 %v681, %v680
    %v692 = vpack.c.b16 %v683, %v682
    %v693 = vpack.c.b16 %v685, %v684
    %702 = vmatprep.subr.bf16.mxu0 0
    %703 = vmatpush1.bf16.msra.mxu0 %v686
    %704 = vmatprep.subr.bf16.mxu0 0
    %705 = vmatpush1.bf16.msra.mxu0 %v687
    %706 = vmatprep.subr.bf16.mxu0 0
    %707 = vmatpush1.bf16.msra.mxu0 %v688
    %708 = vmatprep.subr.bf16.mxu0 0
    %709 = vmatpush1.bf16.msra.mxu0 %v689
    %710 = vmatprep.subr.bf16.mxu0 0
    %711 = vmatpush1.bf16.msra.mxu0 %v690
    %712 = vmatprep.subr.bf16.mxu0 0
    %713 = vmatpush1.bf16.msra.mxu0 %v691
    %714 = vmatprep.subr.bf16.mxu0 0
    %715 = vmatpush1.bf16.msra.mxu0 %v692
    %716 = vmatprep.subr.bf16.mxu0 0
    %717 = vmatpush1.bf16.msra.mxu0 %v693
    %718 = vmatprep.subr.bf16.mxu0 0
    %719 = vmatpush1.bf16.msra.mxu0 0
    %720 = vmatprep.subr.bf16.mxu0 0
    %721 = vmatpush1.bf16.msra.mxu0 0
    %722 = vmatprep.subr.bf16.mxu0 0
    %723 = vmatpush1.bf16.msra.mxu0 0
    %724 = vmatprep.subr.bf16.mxu0 0
    %725 = vmatpush1.bf16.msra.mxu0 0
    %726 = vmatprep.subr.bf16.mxu0 0
    %727 = vmatpush1.bf16.msra.mxu0 0
    %728 = vmatprep.subr.bf16.mxu0 0
    %729 = vmatpush1.bf16.msra.mxu0 0
    %730 = vmatprep.subr.bf16.mxu0 0
    %731 = vmatpush1.bf16.msra.mxu0 0
    %732 = vmatprep.subr.bf16.mxu0 0
    %733 = vmatpush1.bf16.msra.mxu0 0
    %734 = vmatprep.mubr.bf16.mxu0 0
    %735 = vmatmul.mubr.bf16.gmra.mrb[0].mxu0 %v630
    %v736 = vpop.f32.mrb[0].mxu0
    %v737 = vadd.f32 0.0, %v736
    %v738 = vpop.f32.mrb[0].mxu0
    %v739 = vpop.f32.mrb[0].mxu0
    %v740 = vadd.f32 0.0, %v739
    %v741 = vpop.f32.mrb[0].mxu0
    %742 = vmatprep.mubr.bf16.mxu0 0
    %743 = vmatmul.mubr.bf16.gmra.mrb[0].mxu0 %v631
    %v744 = vpop.f32.mrb[0].mxu0
    %v745 = vadd.f32 0.0, %v744
    %v746 = vpop.f32.mrb[0].mxu0
    %v747 = vpop.f32.mrb[0].mxu0
    %v748 = vadd.f32 0.0, %v747
    %v749 = vpop.f32.mrb[0].mxu0
    %750 = vmatprep.mubr.bf16.mxu0 0
    %751 = vmatmul.mubr.bf16.gmra.mrb[0].mxu0 %v632
    %v752 = vpop.f32.mrb[0].mxu0
    %v753 = vadd.f32 0.0, %v752
    %v754 = vpop.f32.mrb[0].mxu0
    %v755 = vpop.f32.mrb[0].mxu0
    %v756 = vadd.f32 0.0, %v755
    %v757 = vpop.f32.mrb[0].mxu0
    %758 = vmatprep.mubr.bf16.mxu0 0
    %759 = vmatmul.mubr.bf16.gmra.mrb[0].mxu0 %v633
    %v760 = vpop.f32.mrb[0].mxu0
    %v761 = vadd.f32 0.0, %v760
    %v762 = vpop.f32.mrb[0].mxu0
    %v763 = vpop.f32.mrb[0].mxu0
    %v764 = vadd.f32 0.0, %v763
    %v765 = vpop.f32.mrb[0].mxu0
    %766 = vmatprep.mubr.bf16.mxu0 0
    %767 = vmatmul.mubr.bf16.gmra.mrb[0].mxu0 %v634
    %v768 = vpop.f32.mrb[0].mxu0
    %v769 = vadd.f32 0.0, %v768
    %v770 = vpop.f32.mrb[0].mxu0
    %v771 = vpop.f32.mrb[0].mxu0
    %v772 = vadd.f32 0.0, %v771
    %v773 = vpop.f32.mrb[0].mxu0
    %774 = vmatprep.mubr.bf16.mxu0 0
    %775 = vmatmul.mubr.bf16.gmra.mrb[0].mxu0 %v635
    %v776 = vpop.f32.mrb[0].mxu0
    %v777 = vadd.f32 0.0, %v776
    %v778 = vpop.f32.mrb[0].mxu0
    %v779 = vpop.f32.mrb[0].mxu0
    %v780 = vadd.f32 0.0, %v779
    %v781 = vpop.f32.mrb[0].mxu0
    %782 = vmatprep.mubr.bf16.mxu0 0
    %783 = vmatmul.mubr.bf16.gmra.mrb[0].mxu0 %v636
    %v784 = vpop.f32.mrb[0].mxu0
    %v785 = vadd.f32 0.0, %v784
    %v786 = vpop.f32.mrb[0].mxu0
    %v787 = vpop.f32.mrb[0].mxu0
    %v788 = vadd.f32 0.0, %v787
    %v789 = vpop.f32.mrb[0].mxu0
    %790 = vmatprep.mubr.bf16.mxu0 0
    %791 = vmatmul.mubr.bf16.gmra.mrb[0].mxu0 %v637
    %v792 = vpop.f32.mrb[0].mxu0
    %v793 = vadd.f32 0.0, %v792
    %v794 = vpop.f32.mrb[0].mxu0
    %v795 = vpop.f32.mrb[0].mxu0
    %v796 = vadd.f32 0.0, %v795
    %v797 = vpop.f32.mrb[0].mxu0
    %798 = vdwg.mxu0
    %v799 = vld [vmem:[%s7] sm:$0x1]
    %v801 = vlaneseq
    %v802 = vshrl.u32 %v801, 7
    %v803 = vsub.s32 0, %v802
    %v804 = vrot.slane %v799, %v803
    %v806 = vmul.f32 %v737, %v804
    %v807 = vmul.f32 %v740, %v804
    %v808 = vmul.f32 %v745, %v804
    %v809 = vmul.f32 %v748, %v804
    %v810 = vmul.f32 %v753, %v804
    %v811 = vmul.f32 %v756, %v804
    %v812 = vmul.f32 %v761, %v804
    %v813 = vmul.f32 %v764, %v804
    %v814 = vmul.f32 %v769, %v804
    %v815 = vmul.f32 %v772, %v804
    %v816 = vmul.f32 %v777, %v804
    %v817 = vmul.f32 %v780, %v804
    %v818 = vmul.f32 %v785, %v804
    %v819 = vmul.f32 %v788, %v804
    %v820 = vmul.f32 %v793, %v804
    %v821 = vmul.f32 %v796, %v804
    %v822 = vld [vmem:[%s8] sm:$0x1]
    %v824 = vlaneseq
    %v825 = vshrl.u32 %v824, 7
    %v826 = vsub.s32 0, %v825
    %v827 = vrot.slane %v822, %v826
    %v829 = vadd.f32 %v806, %v827
    %v830 = vadd.f32 %v807, %v827
    %v831 = vadd.f32 %v808, %v827
    %v832 = vadd.f32 %v809, %v827
    %v833 = vadd.f32 %v810, %v827
    %v834 = vadd.f32 %v811, %v827
    %v835 = vadd.f32 %v812, %v827
    %v836 = vadd.f32 %v813, %v827
    %v837 = vadd.f32 %v814, %v827
    %v838 = vadd.f32 %v815, %v827
    %v839 = vadd.f32 %v816, %v827
    %v840 = vadd.f32 %v817, %v827
    %v841 = vadd.f32 %v818, %v827
    %v842 = vadd.f32 %v819, %v827
    %v843 = vadd.f32 %v820, %v827
    %v844 = vadd.f32 %v821, %v827
    %845 = vst [vmem:[#allocation11] sm:$0xff] %v829
    %846 = vst [vmem:[#allocation11 + $0x8] sm:$0xff] %v830
    %847 = vst [vmem:[#allocation11 + $0x10] sm:$0xff] %v831
    %848 = vst [vmem:[#allocation11 + $0x18] sm:$0xff] %v832
    %849 = vst [vmem:[#allocation11 + $0x20] sm:$0xff] %v833
    %850 = vst [vmem:[#allocation11 + $0x28] sm:$0xff] %v834
    %851 = vst [vmem:[#allocation11 + $0x30] sm:$0xff] %v835
    %852 = vst [vmem:[#allocation11 + $0x38] sm:$0xff] %v836
    %853 = vst [vmem:[#allocation11 + $0x40] sm:$0xff] %v837
    %854 = vst [vmem:[#allocation11 + $0x48] sm:$0xff] %v838
    %855 = vst [vmem:[#allocation11 + $0x50] sm:$0xff] %v839
    %856 = vst [vmem:[#allocation11 + $0x58] sm:$0xff] %v840
    %857 = vst [vmem:[#allocation11 + $0x60] sm:$0xff] %v841
    %858 = vst [vmem:[#allocation11 + $0x68] sm:$0xff] %v842
    %859 = vst [vmem:[#allocation11 + $0x70] sm:$0xff] %v843
    %860 = vst [vmem:[#allocation11 + $0x78] sm:$0xff] %v844
    // Predicated region
    $region58: #{tpu_custom_call.1} parent=1 // pred_check
      _
    $region59: #{tpu_custom_call.1} parent=1 // pred_check_branch
      %862 = sbr.rel (0) target = $region61
    $region60: #{tpu_custom_call.1} parent=1 // pred_region
      %s864 = ssub.s32 2048, 2048
      %865 = vsyncadd [#allocation4], %s864
      %s866 = sshll.u32 [#allocation11], 4
      %s867 = int_to_ptr.vmem [resolvable:$true] %s866
      %872 = dma.vmem_to_hbm [thread:$0]  %s867, 2048, %s9, [#allocation4], 128, 128, 8
    $region61: #{tpu_custom_call.1} parent=1 // pred_fallthru
      _
    // Predicated region
    $region62: #{tpu_custom_call.1} parent=1 // pred_check
      _
    $region63: #{tpu_custom_call.1} parent=1 // pred_check_branch
      %874 = sbr.rel (0) target = $region65
    $region64: #{tpu_custom_call.1} parent=1 // pred_region
      %875 = dma.done [#allocation4], 2048
    $region65: #{tpu_custom_call.1} parent=1 // pred_fallthru
      _
    %876 = vsyncpa [#allocation3], 1
    %877 = vsyncpa [#allocation6], 1
    %878 = vsyncpa [#allocation9], 1
    %879 = vsyncpa [#allocation4], 1

// kernel: tpu_custom_call.1
$region0: #{tpu_custom_call.1}
  #allocation0 [shape = 'u32[]', space=smem, size = 0x4, offset = 0x4, fixed_abs, tag = 'smem constant byte address 0x4 - core index']
  #allocation1 [shape = 'u32[144,128]{1,0:T(1,128)}', space=vmem, size = 0x12000, scoped, tag = 'internal scratch']
  %s0 = inlined_call_operand.hbm [shape: bf16[128,128], index: 0, kind: input, shape index: {}]
  %s1 = inlined_call_operand.hbm [shape: bf16[128,128], index: 1, kind: input, shape index: {}]
  %s2 = inlined_call_operand.hbm [shape: bf16[128,128], index: 2, kind: input, shape index: {}]
  %s3 = inlined_call_operand.hbm [shape: bf16[128,128], index: 3, kind: input, shape index: {}]
  %s4 = inlined_call_operand.vmem [shape: f32[1,128], index: 4, kind: input, shape index: {}]
  %s5 = inlined_call_operand.vmem [shape: f32[1,128], index: 5, kind: input, shape index: {}]
  %s6 = inlined_call_operand.hbm [shape: bf16[128,128], index: 6, kind: input, shape index: {}]
  %s7 = inlined_call_operand.vmem [shape: f32[1,128], index: 7, kind: input, shape index: {}]
  %s8 = inlined_call_operand.vmem [shape: f32[1,128], index: 8, kind: input, shape index: {}]
  %s9 = inlined_call_operand.hbm [shape: f32[128,128], index: 9, kind: output, shape index: {}]
  %s10 = sld [smem:[#allocation0]]
  $region66: #{tpu_custom_call.1} parent=0
    _
  %s12 = ssub.s32 1, %s10
  %s13 = scalar_select 0, %s12, %s10
  $region1: #{tpu_custom_call.1} parent=0
    #allocation2 [shape = 'u8[32768]{0}', space=vmem, size = 0x8000, scoped, tag = 'input window, operand 0, single buffered']
    #allocation3 [shape = 's32[1]{0}', space=sflag, size = 0x4, scoped, tag = 'scoped memory for tpu_custom_call.1']
    #allocation4 [shape = 's32[1]{0}', space=sflag, size = 0x4, scoped, tag = 'scoped memory for tpu_custom_call.1']
    #allocation5 [shape = 'u8[32768]{0}', space=vmem, size = 0x8000, scoped, tag = 'input window, operand 1, single buffered']
    #allocation6 [shape = 's32[1]{0}', space=sflag, size = 0x4, scoped, tag = 'scoped memory for tpu_custom_call.1']
    #allocation7 [shape = 'u8[32768]{0}', space=vmem, size = 0x8000, scoped, tag = 'input window, operand 2, single buffered']
    #allocation8 [shape = 'u8[32768]{0}', space=vmem, size = 0x8000, scoped, tag = 'input window, operand 3, single buffered']
    #allocation9 [shape = 's32[1]{0}', space=sflag, size = 0x4, scoped, tag = 'scoped memory for tpu_custom_call.1']
    #allocation10 [shape = 'u8[32768]{0}', space=vmem, size = 0x8000, scoped, tag = 'input window, operand 6, single buffered']
    #allocation11 [shape = 'u8[65536]{0}', space=vmem, size = 0x10000, scoped, tag = 'output window, operand 0, single buffered']
    %14 = vsyncpa [#allocation3], 0
    %15 = vsyncpa [#allocation6], 0
    %16 = vsyncpa [#allocation9], 0
    %17 = vsyncpa [#allocation4], 0
    // Predicated region
    $region2: #{tpu_custom_call.1} parent=1 // pred_check
      _
    $region3: #{tpu_custom_call.1} parent=1 // pred_check_branch
      %19 = sbr.rel (0) target = $region5
    $region4: #{tpu_custom_call.1} parent=1 // pred_region
      %s21 = ssub.s32 1024, 1024
      %22 = vsyncadd [#allocation3], %s21
      %s23 = sshll.u32 [#allocation2], 4
      %s24 = int_to_ptr.vmem [resolvable:$true] %s23
      %29 = dma.hbm_to_vmem [thread:$0]  %s0, 1024, %s24, [#allocation3], 64, 64, 4
    $region5: #{tpu_custom_call.1} parent=1 // pred_fallthru
      _
    // Predicated region
    $region6: #{tpu_custom_call.1} parent=1 // pred_check
      _
    $region7: #{tpu_custom_call.1} parent=1 // pred_check_branch
      %31 = sbr.rel (0) target = $region9
    $region8: #{tpu_custom_call.1} parent=1 // pred_region
      %s33 = ssub.s32 1024, 1024
      %34 = vsyncadd [#allocation6], %s33
      %s35 = sshll.u32 [#allocation5], 4
      %s36 = int_to_ptr.vmem [resolvable:$true] %s35
      %41 = dma.hbm_to_vmem [thread:$0]  %s1, 1024, %s36, [#allocation6], 64, 64, 4
    $region9: #{tpu_custom_call.1} parent=1 // pred_fallthru
      _
    // Predicated region
    $region10: #{tpu_custom_call.1} parent=1 // pred_check
      _
    $region11: #{tpu_custom_call.1} parent=1 // pred_check_branch
      %43 = sbr.rel (0) target = $region13
    $region12: #{tpu_custom_call.1} parent=1 // pred_region
      %s45 = ssub.s32 1024, 1024
      %46 = vsyncadd [#allocation6], %s45
      %s47 = sshll.u32 [#allocation7], 4
      %s48 = int_to_ptr.vmem [resolvable:$true] %s47
      %53 = dma.hbm_to_vmem [thread:$0]  %s2, 1024, %s48, [#allocation6], 64, 64, 4
    $region13: #{tpu_custom_call.1} parent=1 // pred_fallthru
      _
    // Predicated region
    $region14: #{tpu_custom_call.1} parent=1 // pred_check
      _
    $region15: #{tpu_custom_call.1} parent=1 // pred_check_branch
      %55 = sbr.rel (0) target = $region17
    $region16: #{tpu_custom_call.1} parent=1 // pred_region
      %s57 = ssub.s32 1024, 1024
      %58 = vsyncadd [#allocation9], %s57
      %s59 = sshll.u32 [#allocation8], 4
      %s60 = int_to_ptr.vmem [resolvable:$true] %s59
      %65 = dma.hbm_to_vmem [thread:$0]  %s3, 1024, %s60, [#allocation9], 64, 64, 4
    $region17: #{tpu_custom_call.1} parent=1 // pred_fallthru
      _
    // Predicated region
    $region18: #{tpu_custom_call.1} parent=1 // pred_check
      _
    $region19: #{tpu_custom_call.1} parent=1 // pred_check_branch
      %67 = sbr.rel (0) target = $region21
    $region20: #{tpu_custom_call.1} parent=1 // pred_region
      _
    $region21: #{tpu_custom_call.1} parent=1 // pred_fallthru
      _
    // Predicated region
    $region22: #{tpu_custom_call.1} parent=1 // pred_check
      _
    $region23: #{tpu_custom_call.1} parent=1 // pred_check_branch
      %69 = sbr.rel (0) target = $region25
    $region24: #{tpu_custom_call.1} parent=1 // pred_region
      _
    $region25: #{tpu_custom_call.1} parent=1 // pred_fallthru
      _
    // Predicated region
    $region26: #{tpu_custom_call.1} parent=1 // pred_check
      _
    $region27: #{tpu_custom_call.1} parent=1 // pred_check_branch
      %71 = sbr.rel (0) target = $region29
    $region28: #{tpu_custom_call.1} parent=1 // pred_region
      %s73 = ssub.s32 1024, 1024
      %74 = vsyncadd [#allocation9], %s73
      %s75 = sshll.u32 [#allocation10], 4
      %s76 = int_to_ptr.vmem [resolvable:$true] %s75
      %81 = dma.hbm_to_vmem [thread:$0]  %s6, 1024, %s76, [#allocation9], 64, 64, 4
    $region29: #{tpu_custom_call.1} parent=1 // pred_fallthru
      _
    // Predicated region
    $region30: #{tpu_custom_call.1} parent=1 // pred_check
      _
    $region31: #{tpu_custom_call.1} parent=1 // pred_check_branch
      %83 = sbr.rel (0) target = $region33
    $region32: #{tpu_custom_call.1} parent=1 // pred_region
      _
    $region33: #{tpu_custom_call.1} parent=1 // pred_fallthru
      _
    // Predicated region
    $region34: #{tpu_custom_call.1} parent=1 // pred_check
      _
    $region35: #{tpu_custom_call.1} parent=1 // pred_check_branch
      %85 = sbr.rel (0) target = $region37
    $region36: #{tpu_custom_call.1} parent=1 // pred_region
      _
    $region37: #{tpu_custom_call.1} parent=1 // pred_fallthru
      _
    // Predicated region
    $region38: #{tpu_custom_call.1} parent=1 // pred_check
      _
    $region39: #{tpu_custom_call.1} parent=1 // pred_check_branch
      %87 = sbr.rel (0) target = $region41
    $region40: #{tpu_custom_call.1} parent=1 // pred_region
      %88 = dma.done [#allocation3], 1024
    $region41: #{tpu_custom_call.1} parent=1 // pred_fallthru
      _
    // Predicated region
    $region42: #{tpu_custom_call.1} parent=1 // pred_check
      _
    $region43: #{tpu_custom_call.1} parent=1 // pred_check_branch
      %90 = sbr.rel (0) target = $region45
    $region44: #{tpu_custom_call.1} parent=1 // pred_region
      %91 = dma.done [#allocation6], 1024
    $region45: #{tpu_custom_call.1} parent=1 // pred_fallthru
      _
    // Predicated region
    $region46: #{tpu_custom_call.1} parent=1 // pred_check
      _
    $region47: #{tpu_custom_call.1} parent=1 // pred_check_branch
      %93 = sbr.rel (0) target = $region49
    $region48: #{tpu_custom_call.1} parent=1 // pred_region
      %94 = dma.done [#allocation6], 1024
    $region49: #{tpu_custom_call.1} parent=1 // pred_fallthru
      _
    // Predicated region
    $region50: #{tpu_custom_call.1} parent=1 // pred_check
      _
    $region51: #{tpu_custom_call.1} parent=1 // pred_check_branch
      %96 = sbr.rel (0) target = $region53
    $region52: #{tpu_custom_call.1} parent=1 // pred_region
      %97 = dma.done [#allocation9], 1024
    $region53: #{tpu_custom_call.1} parent=1 // pred_fallthru
      _
    // Predicated region
    $region54: #{tpu_custom_call.1} parent=1 // pred_check
      _
    $region55: #{tpu_custom_call.1} parent=1 // pred_check_branch
      %99 = sbr.rel (0) target = $region57
    $region56: #{tpu_custom_call.1} parent=1 // pred_region
      %100 = dma.done [#allocation9], 1024
    $region57: #{tpu_custom_call.1} parent=1 // pred_fallthru
      _
    %v102 = vld [vmem:[#allocation2] sm:$0xf]
    %v103 = vld [vmem:[#allocation2 + $0x4] sm:$0xf]
    %v104 = vld [vmem:[#allocation2 + $0x8] sm:$0xf]
    %v105 = vld [vmem:[#allocation2 + $0xc] sm:$0xf]
    %v106 = vld [vmem:[#allocation2 + $0x10] sm:$0xf]
    %v107 = vld [vmem:[#allocation2 + $0x14] sm:$0xf]
    %v108 = vld [vmem:[#allocation2 + $0x18] sm:$0xf]
    %v109 = vld [vmem:[#allocation2 + $0x1c] sm:$0xf]
    %v110 = vld [vmem:[#allocation2 + $0x20] sm:$0xf]
    %v111 = vld [vmem:[#allocation2 + $0x24] sm:$0xf]
    %v112 = vld [vmem:[#allocation2 + $0x28] sm:$0xf]
    %v113 = vld [vmem:[#allocation2 + $0x2c] sm:$0xf]
    %v114 = vld [vmem:[#allocation2 + $0x30] sm:$0xf]
    %v115 = vld [vmem:[#allocation2 + $0x34] sm:$0xf]
    %v116 = vld [vmem:[#allocation2 + $0x38] sm:$0xf]
    %v117 = vld [vmem:[#allocation2 + $0x3c] sm:$0xf]
    %v118 = vld [vmem:[#allocation7] sm:$0xf]
    %v119 = vld [vmem:[#allocation7 + $0x4] sm:$0xf]
    %v120 = vld [vmem:[#allocation7 + $0x8] sm:$0xf]
    %v121 = vld [vmem:[#allocation7 + $0xc] sm:$0xf]
    %v122 = vld [vmem:[#allocation7 + $0x10] sm:$0xf]
    %v123 = vld [vmem:[#allocation7 + $0x14] sm:$0xf]
    %v124 = vld [vmem:[#allocation7 + $0x18] sm:$0xf]
    %v125 = vld [vmem:[#allocation7 + $0x1c] sm:$0xf]
    %v126 = vld [vmem:[#allocation7 + $0x20] sm:$0xf]
    %v127 = vld [vmem:[#allocation7 + $0x24] sm:$0xf]
    %v128 = vld [vmem:[#allocation7 + $0x28] sm:$0xf]
    %v129 = vld [vmem:[#allocation7 + $0x2c] sm:$0xf]
    %v130 = vld [vmem:[#allocation7 + $0x30] sm:$0xf]
    %v131 = vld [vmem:[#allocation7 + $0x34] sm:$0xf]
    %v132 = vld [vmem:[#allocation7 + $0x38] sm:$0xf]
    %v133 = vld [vmem:[#allocation7 + $0x3c] sm:$0xf]
    %v134 = vld [vmem:[#allocation5] sm:$0xf]
    %v135 = vld [vmem:[#allocation5 + $0x4] sm:$0xf]
    %v136 = vld [vmem:[#allocation5 + $0x8] sm:$0xf]
    %v137 = vld [vmem:[#allocation5 + $0xc] sm:$0xf]
    %v138 = vld [vmem:[#allocation5 + $0x10] sm:$0xf]
    %v139 = vld [vmem:[#allocation5 + $0x14] sm:$0xf]
    %v140 = vld [vmem:[#allocation5 + $0x18] sm:$0xf]
    %v141 = vld [vmem:[#allocation5 + $0x1c] sm:$0xf]
    %v142 = vld [vmem:[#allocation5 + $0x20] sm:$0xf]
    %v143 = vld [vmem:[#allocation5 + $0x24] sm:$0xf]
    %v144 = vld [vmem:[#allocation5 + $0x28] sm:$0xf]
    %v145 = vld [vmem:[#allocation5 + $0x2c] sm:$0xf]
    %v146 = vld [vmem:[#allocation5 + $0x30] sm:$0xf]
    %v147 = vld [vmem:[#allocation5 + $0x34] sm:$0xf]
    %v148 = vld [vmem:[#allocation5 + $0x38] sm:$0xf]
    %v149 = vld [vmem:[#allocation5 + $0x3c] sm:$0xf]
    %v150 = vld [vmem:[#allocation8] sm:$0xf]
    %v151 = vld [vmem:[#allocation8 + $0x4] sm:$0xf]
    %v152 = vld [vmem:[#allocation8 + $0x8] sm:$0xf]
    %v153 = vld [vmem:[#allocation8 + $0xc] sm:$0xf]
    %v154 = vld [vmem:[#allocation8 + $0x10] sm:$0xf]
    %v155 = vld [vmem:[#allocation8 + $0x14] sm:$0xf]
    %v156 = vld [vmem:[#allocation8 + $0x18] sm:$0xf]
    %v157 = vld [vmem:[#allocation8 + $0x1c] sm:$0xf]
    %v158 = vld [vmem:[#allocation8 + $0x20] sm:$0xf]
    %v159 = vld [vmem:[#allocation8 + $0x24] sm:$0xf]
    %v160 = vld [vmem:[#allocation8 + $0x28] sm:$0xf]
    %v161 = vld [vmem:[#allocation8 + $0x2c] sm:$0xf]
    %v162 = vld [vmem:[#allocation8 + $0x30] sm:$0xf]
    %v163 = vld [vmem:[#allocation8 + $0x34] sm:$0xf]
    %v164 = vld [vmem:[#allocation8 + $0x38] sm:$0xf]
    %v165 = vld [vmem:[#allocation8 + $0x3c] sm:$0xf]
    %v182 = vunpack.c.l.b16 %v134
    %v183 = vunpack.c.l.b16 %v135
    %v184 = vunpack.c.l.b16 %v136
    %v185 = vunpack.c.l.b16 %v137
    %v186 = vunpack.c.l.b16 %v138
    %v187 = vunpack.c.l.b16 %v139
    %v188 = vunpack.c.l.b16 %v140
    %v189 = vunpack.c.l.b16 %v141
    %v190 = vunpack.c.l.b16 %v142
    %v191 = vunpack.c.l.b16 %v143
    %v192 = vunpack.c.l.b16 %v144
    %v193 = vunpack.c.l.b16 %v145
    %v194 = vunpack.c.l.b16 %v146
    %v195 = vunpack.c.l.b16 %v147
    %v196 = vunpack.c.l.b16 %v148
    %v197 = vunpack.c.l.b16 %v149
    %v198 = vpack.c.b16 %v183, %v182
    %v199 = vpack.c.b16 %v185, %v184
    %v200 = vpack.c.b16 %v187, %v186
    %v201 = vpack.c.b16 %v189, %v188
    %v202 = vpack.c.b16 %v191, %v190
    %v203 = vpack.c.b16 %v193, %v192
    %v204 = vpack.c.b16 %v195, %v194
    %v205 = vpack.c.b16 %v197, %v196
    %v230 = vunpack.c.l.b16 %v150
    %v231 = vunpack.c.l.b16 %v151
    %v232 = vunpack.c.l.b16 %v152
    %v233 = vunpack.c.l.b16 %v153
    %v234 = vunpack.c.l.b16 %v154
    %v235 = vunpack.c.l.b16 %v155
    %v236 = vunpack.c.l.b16 %v156
    %v237 = vunpack.c.l.b16 %v157
    %v238 = vunpack.c.l.b16 %v158
    %v239 = vunpack.c.l.b16 %v159
    %v240 = vunpack.c.l.b16 %v160
    %v241 = vunpack.c.l.b16 %v161
    %v242 = vunpack.c.l.b16 %v162
    %v243 = vunpack.c.l.b16 %v163
    %v244 = vunpack.c.l.b16 %v164
    %v245 = vunpack.c.l.b16 %v165
    %v246 = vpack.c.b16 %v231, %v230
    %v247 = vpack.c.b16 %v233, %v232
    %v248 = vpack.c.b16 %v235, %v234
    %v249 = vpack.c.b16 %v237, %v236
    %v250 = vpack.c.b16 %v239, %v238
    %v251 = vpack.c.b16 %v241, %v240
    %v252 = vpack.c.b16 %v243, %v242
    %v253 = vpack.c.b16 %v245, %v244
    %262 = vmatprep.subr.bf16.mxu0 0
    %263 = vmatpush1.bf16.msra.mxu0 %v246
    %264 = vmatprep.subr.bf16.mxu0 0
    %265 = vmatpush1.bf16.msra.mxu0 %v247
    %266 = vmatprep.subr.bf16.mxu0 0
    %267 = vmatpush1.bf16.msra.mxu0 %v248
    %268 = vmatprep.subr.bf16.mxu0 0
    %269 = vmatpush1.bf16.msra.mxu0 %v249
    %270 = vmatprep.subr.bf16.mxu0 0
    %271 = vmatpush1.bf16.msra.mxu0 %v250
    %272 = vmatprep.subr.bf16.mxu0 0
    %273 = vmatpush1.bf16.msra.mxu0 %v251
    %274 = vmatprep.subr.bf16.mxu0 0
    %275 = vmatpush1.bf16.msra.mxu0 %v252
    %276 = vmatprep.subr.bf16.mxu0 0
    %277 = vmatpush1.bf16.msra.mxu0 %v253
    %278 = vmatprep.subr.bf16.mxu0 0
    %279 = vmatpush1.bf16.msra.mxu0 0
    %280 = vmatprep.subr.bf16.mxu0 0
    %281 = vmatpush1.bf16.msra.mxu0 0
    %282 = vmatprep.subr.bf16.mxu0 0
    %283 = vmatpush1.bf16.msra.mxu0 0
    %284 = vmatprep.subr.bf16.mxu0 0
    %285 = vmatpush1.bf16.msra.mxu0 0
    %286 = vmatprep.subr.bf16.mxu0 0
    %287 = vmatpush1.bf16.msra.mxu0 0
    %288 = vmatprep.subr.bf16.mxu0 0
    %289 = vmatpush1.bf16.msra.mxu0 0
    %290 = vmatprep.subr.bf16.mxu0 0
    %291 = vmatpush1.bf16.msra.mxu0 0
    %292 = vmatprep.subr.bf16.mxu0 0
    %293 = vmatpush1.bf16.msra.mxu0 0
    %294 = vmatprep.mubr.bf16.mxu0 0
    %295 = vmatmul.mubr.bf16.gmra.mrb[0].mxu0 %v198
    %v296 = vpop.f32.mrb[0].mxu0
    %v297 = vadd.f32 0.0, %v296
    %v298 = vpop.f32.mrb[0].mxu0
    %v299 = vpop.f32.mrb[0].mxu0
    %v300 = vadd.f32 0.0, %v299
    %v301 = vpop.f32.mrb[0].mxu0
    %302 = vmatprep.mubr.bf16.mxu0 0
    %303 = vmatmul.mubr.bf16.gmra.mrb[0].mxu0 %v199
    %v304 = vpop.f32.mrb[0].mxu0
    %v305 = vadd.f32 0.0, %v304
    %v306 = vpop.f32.mrb[0].mxu0
    %v307 = vpop.f32.mrb[0].mxu0
    %v308 = vadd.f32 0.0, %v307
    %v309 = vpop.f32.mrb[0].mxu0
    %310 = vmatprep.mubr.bf16.mxu0 0
    %311 = vmatmul.mubr.bf16.gmra.mrb[0].mxu0 %v200
    %v312 = vpop.f32.mrb[0].mxu0
    %v313 = vadd.f32 0.0, %v312
    %v314 = vpop.f32.mrb[0].mxu0
    %v315 = vpop.f32.mrb[0].mxu0
    %v316 = vadd.f32 0.0, %v315
    %v317 = vpop.f32.mrb[0].mxu0
    %318 = vmatprep.mubr.bf16.mxu0 0
    %319 = vmatmul.mubr.bf16.gmra.mrb[0].mxu0 %v201
    %v320 = vpop.f32.mrb[0].mxu0
    %v321 = vadd.f32 0.0, %v320
    %v322 = vpop.f32.mrb[0].mxu0
    %v323 = vpop.f32.mrb[0].mxu0
    %v324 = vadd.f32 0.0, %v323
    %v325 = vpop.f32.mrb[0].mxu0
    %326 = vmatprep.mubr.bf16.mxu0 0
    %327 = vmatmul.mubr.bf16.gmra.mrb[0].mxu0 %v202
    %v328 = vpop.f32.mrb[0].mxu0
    %v329 = vadd.f32 0.0, %v328
    %v330 = vpop.f32.mrb[0].mxu0
    %v331 = vpop.f32.mrb[0].mxu0
    %v332 = vadd.f32 0.0, %v331
    %v333 = vpop.f32.mrb[0].mxu0
    %334 = vmatprep.mubr.bf16.mxu0 0
    %335 = vmatmul.mubr.bf16.gmra.mrb[0].mxu0 %v203
    %v336 = vpop.f32.mrb[0].mxu0
    %v337 = vadd.f32 0.0, %v336
    %v338 = vpop.f32.mrb[0].mxu0
    %v339 = vpop.f32.mrb[0].mxu0
    %v340 = vadd.f32 0.0, %v339
    %v341 = vpop.f32.mrb[0].mxu0
    %342 = vmatprep.mubr.bf16.mxu0 0
    %343 = vmatmul.mubr.bf16.gmra.mrb[0].mxu0 %v204
    %v344 = vpop.f32.mrb[0].mxu0
    %v345 = vadd.f32 0.0, %v344
    %v346 = vpop.f32.mrb[0].mxu0
    %v347 = vpop.f32.mrb[0].mxu0
    %v348 = vadd.f32 0.0, %v347
    %v349 = vpop.f32.mrb[0].mxu0
    %350 = vmatprep.mubr.bf16.mxu0 0
    %351 = vmatmul.mubr.bf16.gmra.mrb[0].mxu0 %v205
    %v352 = vpop.f32.mrb[0].mxu0
    %v353 = vadd.f32 0.0, %v352
    %v354 = vpop.f32.mrb[0].mxu0
    %v355 = vpop.f32.mrb[0].mxu0
    %v356 = vadd.f32 0.0, %v355
    %v357 = vpop.f32.mrb[0].mxu0
    %358 = vdwg.mxu0
    %v375 = vunpack.c.l.b16 %v102
    %v376 = vunpack.c.l.b16 %v103
    %v377 = vunpack.c.l.b16 %v104
    %v378 = vunpack.c.l.b16 %v105
    %v379 = vunpack.c.l.b16 %v106
    %v380 = vunpack.c.l.b16 %v107
    %v381 = vunpack.c.l.b16 %v108
    %v382 = vunpack.c.l.b16 %v109
    %v383 = vunpack.c.l.b16 %v110
    %v384 = vunpack.c.l.b16 %v111
    %v385 = vunpack.c.l.b16 %v112
    %v386 = vunpack.c.l.b16 %v113
    %v387 = vunpack.c.l.b16 %v114
    %v388 = vunpack.c.l.b16 %v115
    %v389 = vunpack.c.l.b16 %v116
    %v390 = vunpack.c.l.b16 %v117
    %v391 = vpack.c.b16 %v376, %v375
    %v392 = vpack.c.b16 %v378, %v377
    %v393 = vpack.c.b16 %v380, %v379
    %v394 = vpack.c.b16 %v382, %v381
    %v395 = vpack.c.b16 %v384, %v383
    %v396 = vpack.c.b16 %v386, %v385
    %v397 = vpack.c.b16 %v388, %v387
    %v398 = vpack.c.b16 %v390, %v389
    %v423 = vunpack.c.l.b16 %v118
    %v424 = vunpack.c.l.b16 %v119
    %v425 = vunpack.c.l.b16 %v120
    %v426 = vunpack.c.l.b16 %v121
    %v427 = vunpack.c.l.b16 %v122
    %v428 = vunpack.c.l.b16 %v123
    %v429 = vunpack.c.l.b16 %v124
    %v430 = vunpack.c.l.b16 %v125
    %v431 = vunpack.c.l.b16 %v126
    %v432 = vunpack.c.l.b16 %v127
    %v433 = vunpack.c.l.b16 %v128
    %v434 = vunpack.c.l.b16 %v129
    %v435 = vunpack.c.l.b16 %v130
    %v436 = vunpack.c.l.b16 %v131
    %v437 = vunpack.c.l.b16 %v132
    %v438 = vunpack.c.l.b16 %v133
    %v439 = vpack.c.b16 %v424, %v423
    %v440 = vpack.c.b16 %v426, %v425
    %v441 = vpack.c.b16 %v428, %v427
    %v442 = vpack.c.b16 %v430, %v429
    %v443 = vpack.c.b16 %v432, %v431
    %v444 = vpack.c.b16 %v434, %v433
    %v445 = vpack.c.b16 %v436, %v435
    %v446 = vpack.c.b16 %v438, %v437
    %455 = vmatprep.subr.bf16.mxu0 0
    %456 = vmatpush1.bf16.msra.mxu0 %v439
    %457 = vmatprep.subr.bf16.mxu0 0
    %458 = vmatpush1.bf16.msra.mxu0 %v440
    %459 = vmatprep.subr.bf16.mxu0 0
    %460 = vmatpush1.bf16.msra.mxu0 %v441
    %461 = vmatprep.subr.bf16.mxu0 0
    %462 = vmatpush1.bf16.msra.mxu0 %v442
    %463 = vmatprep.subr.bf16.mxu0 0
    %464 = vmatpush1.bf16.msra.mxu0 %v443
    %465 = vmatprep.subr.bf16.mxu0 0
    %466 = vmatpush1.bf16.msra.mxu0 %v444
    %467 = vmatprep.subr.bf16.mxu0 0
    %468 = vmatpush1.bf16.msra.mxu0 %v445
    %469 = vmatprep.subr.bf16.mxu0 0
    %470 = vmatpush1.bf16.msra.mxu0 %v446
    %471 = vmatprep.subr.bf16.mxu0 0
    %472 = vmatpush1.bf16.msra.mxu0 0
    %473 = vmatprep.subr.bf16.mxu0 0
    %474 = vmatpush1.bf16.msra.mxu0 0
    %475 = vmatprep.subr.bf16.mxu0 0
    %476 = vmatpush1.bf16.msra.mxu0 0
    %477 = vmatprep.subr.bf16.mxu0 0
    %478 = vmatpush1.bf16.msra.mxu0 0
    %479 = vmatprep.subr.bf16.mxu0 0
    %480 = vmatpush1.bf16.msra.mxu0 0
    %481 = vmatprep.subr.bf16.mxu0 0
    %482 = vmatpush1.bf16.msra.mxu0 0
    %483 = vmatprep.subr.bf16.mxu0 0
    %484 = vmatpush1.bf16.msra.mxu0 0
    %485 = vmatprep.subr.bf16.mxu0 0
    %486 = vmatpush1.bf16.msra.mxu0 0
    %487 = vmatprep.mubr.bf16.mxu0 0
    %488 = vmatmul.mubr.bf16.gmra.mrb[0].mxu0 %v391
    %v489 = vpop.f32.mrb[0].mxu0
    %v490 = vadd.f32 %v297, %v489
    %v491 = vpop.f32.mrb[0].mxu0
    %v492 = vpop.f32.mrb[0].mxu0
    %v493 = vadd.f32 %v300, %v492
    %v494 = vpop.f32.mrb[0].mxu0
    %495 = vmatprep.mubr.bf16.mxu0 0
    %496 = vmatmul.mubr.bf16.gmra.mrb[0].mxu0 %v392
    %v497 = vpop.f32.mrb[0].mxu0
    %v498 = vadd.f32 %v305, %v497
    %v499 = vpop.f32.mrb[0].mxu0
    %v500 = vpop.f32.mrb[0].mxu0
    %v501 = vadd.f32 %v308, %v500
    %v502 = vpop.f32.mrb[0].mxu0
    %503 = vmatprep.mubr.bf16.mxu0 0
    %504 = vmatmul.mubr.bf16.gmra.mrb[0].mxu0 %v393
    %v505 = vpop.f32.mrb[0].mxu0
    %v506 = vadd.f32 %v313, %v505
    %v507 = vpop.f32.mrb[0].mxu0
    %v508 = vpop.f32.mrb[0].mxu0
    %v509 = vadd.f32 %v316, %v508
    %v510 = vpop.f32.mrb[0].mxu0
    %511 = vmatprep.mubr.bf16.mxu0 0
    %512 = vmatmul.mubr.bf16.gmra.mrb[0].mxu0 %v394
    %v513 = vpop.f32.mrb[0].mxu0
    %v514 = vadd.f32 %v321, %v513
    %v515 = vpop.f32.mrb[0].mxu0
    %v516 = vpop.f32.mrb[0].mxu0
    %v517 = vadd.f32 %v324, %v516
    %v518 = vpop.f32.mrb[0].mxu0
    %519 = vmatprep.mubr.bf16.mxu0 0
    %520 = vmatmul.mubr.bf16.gmra.mrb[0].mxu0 %v395
    %v521 = vpop.f32.mrb[0].mxu0
    %v522 = vadd.f32 %v329, %v521
    %v523 = vpop.f32.mrb[0].mxu0
    %v524 = vpop.f32.mrb[0].mxu0
    %v525 = vadd.f32 %v332, %v524
    %v526 = vpop.f32.mrb[0].mxu0
    %527 = vmatprep.mubr.bf16.mxu0 0
    %528 = vmatmul.mubr.bf16.gmra.mrb[0].mxu0 %v396
    %v529 = vpop.f32.mrb[0].mxu0
    %v530 = vadd.f32 %v337, %v529
    %v531 = vpop.f32.mrb[0].mxu0
    %v532 = vpop.f32.mrb[0].mxu0
    %v533 = vadd.f32 %v340, %v532
    %v534 = vpop.f32.mrb[0].mxu0
    %535 = vmatprep.mubr.bf16.mxu0 0
    %536 = vmatmul.mubr.bf16.gmra.mrb[0].mxu0 %v397
    %v537 = vpop.f32.mrb[0].mxu0
    %v538 = vadd.f32 %v345, %v537
    %v539 = vpop.f32.mrb[0].mxu0
    %v540 = vpop.f32.mrb[0].mxu0
    %v541 = vadd.f32 %v348, %v540
    %v542 = vpop.f32.mrb[0].mxu0
    %543 = vmatprep.mubr.bf16.mxu0 0
    %544 = vmatmul.mubr.bf16.gmra.mrb[0].mxu0 %v398
    %v545 = vpop.f32.mrb[0].mxu0
    %v546 = vadd.f32 %v353, %v545
    %v547 = vpop.f32.mrb[0].mxu0
    %v548 = vpop.f32.mrb[0].mxu0
    %v549 = vadd.f32 %v356, %v548
    %v550 = vpop.f32.mrb[0].mxu0
    %551 = vdwg.mxu0
    %v552 = vld [vmem:[%s4] sm:$0x1]
    %v554 = vlaneseq
    %v555 = vshrl.u32 %v554, 7
    %v556 = vsub.s32 0, %v555
    %v557 = vrot.slane %v552, %v556
    %v559 = vmul.f32 %v490, %v557
    %v560 = vmul.f32 %v493, %v557
    %v561 = vmul.f32 %v498, %v557
    %v562 = vmul.f32 %v501, %v557
    %v563 = vmul.f32 %v506, %v557
    %v564 = vmul.f32 %v509, %v557
    %v565 = vmul.f32 %v514, %v557
    %v566 = vmul.f32 %v517, %v557
    %v567 = vmul.f32 %v522, %v557
    %v568 = vmul.f32 %v525, %v557
    %v569 = vmul.f32 %v530, %v557
    %v570 = vmul.f32 %v533, %v557
    %v571 = vmul.f32 %v538, %v557
    %v572 = vmul.f32 %v541, %v557
    %v573 = vmul.f32 %v546, %v557
    %v574 = vmul.f32 %v549, %v557
    %v575 = vld [vmem:[%s5] sm:$0x1]
    %v577 = vlaneseq
    %v578 = vshrl.u32 %v577, 7
    %v579 = vsub.s32 0, %v578
    %v580 = vrot.slane %v575, %v579
    %v582 = vadd.f32 %v559, %v580
    %v583 = vadd.f32 %v560, %v580
    %v584 = vadd.f32 %v561, %v580
    %v585 = vadd.f32 %v562, %v580
    %v586 = vadd.f32 %v563, %v580
    %v587 = vadd.f32 %v564, %v580
    %v588 = vadd.f32 %v565, %v580
    %v589 = vadd.f32 %v566, %v580
    %v590 = vadd.f32 %v567, %v580
    %v591 = vadd.f32 %v568, %v580
    %v592 = vadd.f32 %v569, %v580
    %v593 = vadd.f32 %v570, %v580
    %v594 = vadd.f32 %v571, %v580
    %v595 = vadd.f32 %v572, %v580
    %v596 = vadd.f32 %v573, %v580
    %v597 = vadd.f32 %v574, %v580
    %v598 = vmax.f32 %v582, 0.0
    %v599 = vmax.f32 %v583, 0.0
    %v600 = vmax.f32 %v584, 0.0
    %v601 = vmax.f32 %v585, 0.0
    %v602 = vmax.f32 %v586, 0.0
    %v603 = vmax.f32 %v587, 0.0
    %v604 = vmax.f32 %v588, 0.0
    %v605 = vmax.f32 %v589, 0.0
    %v606 = vmax.f32 %v590, 0.0
    %v607 = vmax.f32 %v591, 0.0
    %v608 = vmax.f32 %v592, 0.0
    %v609 = vmax.f32 %v593, 0.0
    %v610 = vmax.f32 %v594, 0.0
    %v611 = vmax.f32 %v595, 0.0
    %v612 = vmax.f32 %v596, 0.0
    %v613 = vmax.f32 %v597, 0.0
    %v614 = vmin.f32 %v598, 6.0
    %v615 = vmin.f32 %v599, 6.0
    %v616 = vmin.f32 %v600, 6.0
    %v617 = vmin.f32 %v601, 6.0
    %v618 = vmin.f32 %v602, 6.0
    %v619 = vmin.f32 %v603, 6.0
    %v620 = vmin.f32 %v604, 6.0
    %v621 = vmin.f32 %v605, 6.0
    %v622 = vmin.f32 %v606, 6.0
    %v623 = vmin.f32 %v607, 6.0
    %v624 = vmin.f32 %v608, 6.0
    %v625 = vmin.f32 %v609, 6.0
    %v626 = vmin.f32 %v610, 6.0
    %v627 = vmin.f32 %v611, 6.0
    %v628 = vmin.f32 %v612, 6.0
    %v629 = vmin.f32 %v613, 6.0
    %v630 = vpack.c.bf16 %v615, %v614
    %v631 = vpack.c.bf16 %v617, %v616
    %v632 = vpack.c.bf16 %v619, %v618
    %v633 = vpack.c.bf16 %v621, %v620
    %v634 = vpack.c.bf16 %v623, %v622
    %v635 = vpack.c.bf16 %v625, %v624
    %v636 = vpack.c.bf16 %v627, %v626
    %v637 = vpack.c.bf16 %v629, %v628
    %v638 = vld [vmem:[#allocation10] sm:$0xf]
    %v639 = vld [vmem:[#allocation10 + $0x4] sm:$0xf]
    %v640 = vld [vmem:[#allocation10 + $0x8] sm:$0xf]
    %v641 = vld [vmem:[#allocation10 + $0xc] sm:$0xf]
    %v642 = vld [vmem:[#allocation10 + $0x10] sm:$0xf]
    %v643 = vld [vmem:[#allocation10 + $0x14] sm:$0xf]
    %v644 = vld [vmem:[#allocation10 + $0x18] sm:$0xf]
    %v645 = vld [vmem:[#allocation10 + $0x1c] sm:$0xf]
    %v646 = vld [vmem:[#allocation10 + $0x20] sm:$0xf]
    %v647 = vld [vmem:[#allocation10 + $0x24] sm:$0xf]
    %v648 = vld [vmem:[#allocation10 + $0x28] sm:$0xf]
    %v649 = vld [vmem:[#allocation10 + $0x2c] sm:$0xf]
    %v650 = vld [vmem:[#allocation10 + $0x30] sm:$0xf]
    %v651 = vld [vmem:[#allocation10 + $0x34] sm:$0xf]
    %v652 = vld [vmem:[#allocation10 + $0x38] sm:$0xf]
    %v653 = vld [vmem:[#allocation10 + $0x3c] sm:$0xf]
    %v670 = vunpack.c.l.b16 %v638
    %v671 = vunpack.c.l.b16 %v639
    %v672 = vunpack.c.l.b16 %v640
    %v673 = vunpack.c.l.b16 %v641
    %v674 = vunpack.c.l.b16 %v642
    %v675 = vunpack.c.l.b16 %v643
    %v676 = vunpack.c.l.b16 %v644
    %v677 = vunpack.c.l.b16 %v645
    %v678 = vunpack.c.l.b16 %v646
    %v679 = vunpack.c.l.b16 %v647
    %v680 = vunpack.c.l.b16 %v648
    %v681 = vunpack.c.l.b16 %v649
    %v682 = vunpack.c.l.b16 %v650
    %v683 = vunpack.c.l.b16 %v651
    %v684 = vunpack.c.l.b16 %v652
    %v685 = vunpack.c.l.b16 %v653
    %v686 = vpack.c.b16 %v671, %v670
    %v687 = vpack.c.b16 %v673, %v672
    %v688 = vpack.c.b16 %v675, %v674
    %v689 = vpack.c.b16 %v677, %v676
    %v690 = vpack.c.b16 %v679, %v678
    %v691 = vpack.c.b16 %v681, %v680
    %v692 = vpack.c.b16 %v683, %v682
    %v693 = vpack.c.b16 %v685, %v684
    %702 = vmatprep.subr.bf16.mxu0 0
    %703 = vmatpush1.bf16.msra.mxu0 %v686
    %704 = vmatprep.subr.bf16.mxu0 0
    %705 = vmatpush1.bf16.msra.mxu0 %v687
    %706 = vmatprep.subr.bf16.mxu0 0
    %707 = vmatpush1.bf16.msra.mxu0 %v688
    %708 = vmatprep.subr.bf16.mxu0 0
    %709 = vmatpush1.bf16.msra.mxu0 %v689
    %710 = vmatprep.subr.bf16.mxu0 0
    %711 = vmatpush1.bf16.msra.mxu0 %v690
    %712 = vmatprep.subr.bf16.mxu0 0
    %713 = vmatpush1.bf16.msra.mxu0 %v691
    %714 = vmatprep.subr.bf16.mxu0 0
    %715 = vmatpush1.bf16.msra.mxu0 %v692
    %716 = vmatprep.subr.bf16.mxu0 0
    %717 = vmatpush1.bf16.msra.mxu0 %v693
    %718 = vmatprep.subr.bf16.mxu0 0
    %719 = vmatpush1.bf16.msra.mxu0 0
    %720 = vmatprep.subr.bf16.mxu0 0
    %721 = vmatpush1.bf16.msra.mxu0 0
    %722 = vmatprep.subr.bf16.mxu0 0
    %723 = vmatpush1.bf16.msra.mxu0 0
    %724 = vmatprep.subr.bf16.mxu0 0
    %725 = vmatpush1.bf16.msra.mxu0 0
    %726 = vmatprep.subr.bf16.mxu0 0
    %727 = vmatpush1.bf16.msra.mxu0 0
    %728 = vmatprep.subr.bf16.mxu0 0
    %729 = vmatpush1.bf16.msra.mxu0 0
    %730 = vmatprep.subr.bf16.mxu0 0
    %731 = vmatpush1.bf16.msra.mxu0 0
    %732 = vmatprep.subr.bf16.mxu0 0
    %733 = vmatpush1.bf16.msra.mxu0 0
    %734 = vmatprep.mubr.bf16.mxu0 0
    %735 = vmatmul.mubr.bf16.gmra.mrb[0].mxu0 %v630
    %v736 = vpop.f32.mrb[0].mxu0
    %v737 = vadd.f32 0.0, %v736
    %v738 = vpop.f32.mrb[0].mxu0
    %v739 = vpop.f32.mrb[0].mxu0
    %v740 = vadd.f32 0.0, %v739
    %v741 = vpop.f32.mrb[0].mxu0
    %742 = vmatprep.mubr.bf16.mxu0 0
    %743 = vmatmul.mubr.bf16.gmra.mrb[0].mxu0 %v631
    %v744 = vpop.f32.mrb[0].mxu0
    %v745 = vadd.f32 0.0, %v744
    %v746 = vpop.f32.mrb[0].mxu0
    %v747 = vpop.f32.mrb[0].mxu0
    %v748 = vadd.f32 0.0, %v747
    %v749 = vpop.f32.mrb[0].mxu0
    %750 = vmatprep.mubr.bf16.mxu0 0
    %751 = vmatmul.mubr.bf16.gmra.mrb[0].mxu0 %v632
    %v752 = vpop.f32.mrb[0].mxu0
    %v753 = vadd.f32 0.0, %v752
    %v754 = vpop.f32.mrb[0].mxu0
    %v755 = vpop.f32.mrb[0].mxu0
    %v756 = vadd.f32 0.0, %v755
    %v757 = vpop.f32.mrb[0].mxu0
    %758 = vmatprep.mubr.bf16.mxu0 0
    %759 = vmatmul.mubr.bf16.gmra.mrb[0].mxu0 %v633
    %v760 = vpop.f32.mrb[0].mxu0
    %v761 = vadd.f32 0.0, %v760
    %v762 = vpop.f32.mrb[0].mxu0
    %v763 = vpop.f32.mrb[0].mxu0
    %v764 = vadd.f32 0.0, %v763
    %v765 = vpop.f32.mrb[0].mxu0
    %766 = vmatprep.mubr.bf16.mxu0 0
    %767 = vmatmul.mubr.bf16.gmra.mrb[0].mxu0 %v634
    %v768 = vpop.f32.mrb[0].mxu0
    %v769 = vadd.f32 0.0, %v768
    %v770 = vpop.f32.mrb[0].mxu0
    %v771 = vpop.f32.mrb[0].mxu0
    %v772 = vadd.f32 0.0, %v771
    %v773 = vpop.f32.mrb[0].mxu0
    %774 = vmatprep.mubr.bf16.mxu0 0
    %775 = vmatmul.mubr.bf16.gmra.mrb[0].mxu0 %v635
    %v776 = vpop.f32.mrb[0].mxu0
    %v777 = vadd.f32 0.0, %v776
    %v778 = vpop.f32.mrb[0].mxu0
    %v779 = vpop.f32.mrb[0].mxu0
    %v780 = vadd.f32 0.0, %v779
    %v781 = vpop.f32.mrb[0].mxu0
    %782 = vmatprep.mubr.bf16.mxu0 0
    %783 = vmatmul.mubr.bf16.gmra.mrb[0].mxu0 %v636
    %v784 = vpop.f32.mrb[0].mxu0
    %v785 = vadd.f32 0.0, %v784
    %v786 = vpop.f32.mrb[0].mxu0
    %v787 = vpop.f32.mrb[0].mxu0
    %v788 = vadd.f32 0.0, %v787
    %v789 = vpop.f32.mrb[0].mxu0
    %790 = vmatprep.mubr.bf16.mxu0 0
    %791 = vmatmul.mubr.bf16.gmra.mrb[0].mxu0 %v637
    %v792 = vpop.f32.mrb[0].mxu0
    %v793 = vadd.f32 0.0, %v792
    %v794 = vpop.f32.mrb[0].mxu0
    %v795 = vpop.f32.mrb[0].mxu0
    %v796 = vadd.f32 0.0, %v795
    %v797 = vpop.f32.mrb[0].mxu0
    %798 = vdwg.mxu0
    %v799 = vld [vmem:[%s7] sm:$0x1]
    %v801 = vlaneseq
    %v802 = vshrl.u32 %v801, 7
    %v803 = vsub.s32 0, %v802
    %v804 = vrot.slane %v799, %v803
    %v806 = vmul.f32 %v737, %v804
    %v807 = vmul.f32 %v740, %v804
    %v808 = vmul.f32 %v745, %v804
    %v809 = vmul.f32 %v748, %v804
    %v810 = vmul.f32 %v753, %v804
    %v811 = vmul.f32 %v756, %v804
    %v812 = vmul.f32 %v761, %v804
    %v813 = vmul.f32 %v764, %v804
    %v814 = vmul.f32 %v769, %v804
    %v815 = vmul.f32 %v772, %v804
    %v816 = vmul.f32 %v777, %v804
    %v817 = vmul.f32 %v780, %v804
    %v818 = vmul.f32 %v785, %v804
    %v819 = vmul.f32 %v788, %v804
    %v820 = vmul.f32 %v793, %v804
    %v821 = vmul.f32 %v796, %v804
    %v822 = vld [vmem:[%s8] sm:$0x1]
    %v824 = vlaneseq
    %v825 = vshrl.u32 %v824, 7
    %v826 = vsub.s32 0, %v825
    %v827 = vrot.slane %v822, %v826
    %v829 = vadd.f32 %v806, %v827
    %v830 = vadd.f32 %v807, %v827
    %v831 = vadd.f32 %v808, %v827
    %v832 = vadd.f32 %v809, %v827
    %v833 = vadd.f32 %v810, %v827
    %v834 = vadd.f32 %v811, %v827
    %v835 = vadd.f32 %v812, %v827
    %v836 = vadd.f32 %v813, %v827
    %v837 = vadd.f32 %v814, %v827
    %v838 = vadd.f32 %v815, %v827
    %v839 = vadd.f32 %v816, %v827
    %v840 = vadd.f32 %v817, %v827
    %v841 = vadd.f32 %v818, %v827
    %v842 = vadd.f32 %v819, %v827
    %v843 = vadd.f32 %v820, %v827
    %v844 = vadd.f32 %v821, %v827
    %845 = vst [vmem:[#allocation11] sm:$0xff] %v829
    %846 = vst [vmem:[#allocation11 + $0x8] sm:$0xff] %v830
    %847 = vst [vmem:[#allocation11 + $0x10] sm:$0xff] %v831
    %848 = vst [vmem:[#allocation11 + $0x18] sm:$0xff] %v832
    %849 = vst [vmem:[#allocation11 + $0x20] sm:$0xff] %v833
    %850 = vst [vmem:[#allocation11 + $0x28] sm:$0xff] %v834
    %851 = vst [vmem:[#allocation11 + $0x30] sm:$0xff] %v835
    %852 = vst [vmem:[#allocation11 + $0x38] sm:$0xff] %v836
    %853 = vst [vmem:[#allocation11 + $0x40] sm:$0xff] %v837
    %854 = vst [vmem:[#allocation11 + $0x48] sm:$0xff] %v838
    %855 = vst [vmem:[#allocation11 + $0x50] sm:$0xff] %v839
    %856 = vst [vmem:[#allocation11 + $0x58] sm:$0xff] %v840
    %857 = vst [vmem:[#allocation11 + $0x60] sm:$0xff] %v841
    %858 = vst [vmem:[#allocation11 + $0x68] sm:$0xff] %v842
    %859 = vst [vmem:[#allocation11 + $0x70] sm:$0xff] %v843
    %860 = vst [vmem:[#allocation11 + $0x78] sm:$0xff] %v844
    // Predicated region
    $region58: #{tpu_custom_call.1} parent=1 // pred_check
      _
    $region59: #{tpu_custom_call.1} parent=1 // pred_check_branch
      %862 = sbr.rel (0) target = $region61
    $region60: #{tpu_custom_call.1} parent=1 // pred_region
      %s864 = ssub.s32 2048, 2048
      %865 = vsyncadd [#allocation4], %s864
      %s866 = sshll.u32 [#allocation11], 4
      %s867 = int_to_ptr.vmem [resolvable:$true] %s866
      %872 = dma.vmem_to_hbm [thread:$0]  %s867, 2048, %s9, [#allocation4], 128, 128, 8
    $region61: #{tpu_custom_call.1} parent=1 // pred_fallthru
      _
    // Predicated region
    $region62: #{tpu_custom_call.1} parent=1 // pred_check
      _
    $region63: #{tpu_custom_call.1} parent=1 // pred_check_branch
      %874 = sbr.rel (0) target = $region65
    $region64: #{tpu_custom_call.1} parent=1 // pred_region
      %875 = dma.done [#allocation4], 2048
    $region65: #{tpu_custom_call.1} parent=1 // pred_fallthru
      _
    %876 = vsyncpa [#allocation3], 1
    %877 = vsyncpa [#allocation6], 1
    %878 = vsyncpa [#allocation9], 1
    %879 = vsyncpa [#allocation4], 1

</llo_original>
